<compile_context>
chip_gen: v7x
topology: tpu7x:2x2x1
jax: 0.10.0
libtpu: 0.0.40
codegen_flags: <defaults>
</compile_context>

<pallas_src>
import math
from functools import partial

import jax
import jax.numpy as jnp
from jax.experimental import pallas as pl
from jax.experimental.pallas import tpu as pltpu

_BN_EPS = 1e-5
# eval-mode BatchNorm: running_mean=0, running_var=1, gamma=1, beta=0
_BN_SCALE = 1.0 / math.sqrt(1.0 + _BN_EPS)
# TODO(synk): PyTorch BatchNorm2d in train mode uses batch statistics; the
# deterministic eval-mode (running-stats) semantics are implemented here.

_SUBLANE_PACK = 16                       # bf16 sublane packing
_IM2COL_BUDGET_BYTES = 6 * 1024 * 1024   # full 9-tap slab above this -> row-group fold
_BAND_BUDGET_BYTES = 8 * 1024 * 1024     # per-band working-set target
_MAX_HW_CHUNK = 32768                    # elements per pooled-reduction chunk


# ---------------------------------------------------------------------------
# Small sizing helpers (per-generation VMEM budget, chunk / band picking)
# ---------------------------------------------------------------------------
def _vmem_limit_bytes():
    """~80% of physical VMEM (~100 MiB on v5e/v6e's 128 MiB, ~51 MiB on v7x's 64)."""
    try:
        return int(pltpu.get_tpu_info().vmem_capacity_bytes * 0.8)
    except Exception:
        return 48 * 1024 * 1024          # conservative fallback


def _pick_hw_chunk(HW):
    """Largest multiple-of-128 divisor of HW that fits the chunk budget."""
    if HW <= _MAX_HW_CHUNK:
        return HW
    c = _MAX_HW_CHUNK - (_MAX_HW_CHUNK % 128)
    while c >= 128:
        if HW % c == 0:
            return c
        c -= 128
    return HW                            # fallback: single chunk


def _pick_band(oh, Wp, cp, Co, kh, kw):
    """Output row-band height: keeps band*Wp a multiple of 128 (lane-dense,
    unmasked stores) and the per-band working set (im2col + f32 acc + out)
    bounded so it fits v7x's 64 MiB with double-buffer headroom."""
    unit = 128 // math.gcd(Wp, 128)      # smallest bh with (bh*Wp) % 128 == 0
    per_row = Wp * (kh * kw * cp * 2 + Co * 4 + 2 * Co * 2)
    if oh * per_row <= _BAND_BUDGET_BYTES or oh <= unit:
        return oh, 1
    bh = max(unit, (_BAND_BUDGET_BYTES // per_row) // unit * unit)
    while bh > unit and oh % bh:
        bh -= unit
    if oh % bh:
        # TODO(synk): ragged last band (cdiv grid + masked crop) or lane-pad Wp.
        return oh, 1
    return bh, oh // bh


# ---------------------------------------------------------------------------
# Kernel 1: M_CFG — masked global-avg-pool + two tiny MLP branches + softmax
#   grid = (batch "parallel", HW-chunk "arbitrary"); f32 accumulator scratch.
# ---------------------------------------------------------------------------
def _theta_kernel(T, hw_inv,
                  c_ref, b_ref, m_ref,
                  w11a_ref, w11b_ref, w12t_ref, b12_ref,
                  w21a_ref, w21b_ref, w22t_ref, b22_ref,
                  out_ref, acc_c_ref, acc_b_ref):
    j = pl.program_id(1)

    @pl.when(j == 0)
    def _():
        acc_c_ref[...] = jnp.zeros_like(acc_c_ref)
        acc_b_ref[...] = jnp.zeros_like(acc_b_ref)

    # masked partial sums over this HW chunk (bf16 inputs, f32 accumulation).
    m = m_ref[...].astype(jnp.float32)                           # (1, 1, HC)
    acc_c_ref[...] += jnp.sum(c_ref[...].astype(jnp.float32) * m, axis=2)
    acc_b_ref[...] += jnp.sum(b_ref[...].astype(jnp.float32) * m, axis=2)

    @pl.when(j == pl.num_programs(1) - 1)
    def _():
        mc = acc_c_ref[...] * hw_inv                             # (1, Cin)
        mb = acc_b_ref[...] * hw_inv

        def branch(wa, wb, wt, bias):
            # fc*_1 (1x1 conv, no bias) on pooled features, split by concat halves
            h = (jnp.dot(mc, wa, preferred_element_type=jnp.float32)
                 + jnp.dot(mb, wb, preferred_element_type=jnp.float32))
            h = jnp.maximum(h * _BN_SCALE, 0.0)                  # bn*_1 + relu
            z = (jnp.dot(h, wt, preferred_element_type=jnp.float32) + bias) * _BN_SCALE
            z = z * (1.0 / T)
            z = z - jnp.max(z, axis=-1, keepdims=True)           # softmax over K*Cin
            e = jnp.exp(z)
            return e / jnp.sum(e, axis=-1, keepdims=True)

        tc = branch(w11a_ref[...], w11b_ref[...], w12t_ref[...], b12_ref[...])
        tb = branch(w21a_ref[...], w21b_ref[...], w22t_ref[...], b22_ref[...])
        out_ref[0] = jnp.concatenate([tc, tb], axis=-1)          # (1, 2*K*Cin)


def m_cfg_forward(center, boundary, mask, p, T, vmem_limit):
    B, Cin, H, W = center.shape
    HW = H * W
    KC = p["w12"].shape[0]
    hid = p["w11"].shape[0]

    HC = _pick_hw_chunk(HW)
    nhw = HW // HC

    # lane-dense inputs: last dim H*W chunks (>=128 at production sizes).
    c2 = center.reshape(B, Cin, HW)
    b2 = boundary.reshape(B, Cin, HW)
    m2 = mask.reshape(B, 1, HW)

    # pre-transpose / split weights so the kernel only does plain x @ W
    w11a = p["w11"][:, :Cin].T       # (Cin, hidden)
    w11b = p["w11"][:, Cin:].T
    w21a = p["w21"][:, :Cin].T
    w21b = p["w21"][:, Cin:].T
    w12t = p["w12"].T                # (hidden, K*Cin)
    w22t = p["w22"].T
    b12 = p["b12"][None, :]          # (1, K*Cin)
    b22 = p["b22"][None, :]

    chunk = lambda i, j: (i, 0, j)
    const2 = lambda i, j: (0, 0)
    kernel = partial(_theta_kernel, float(T), 1.0 / float(HW))
    packed = pl.pallas_call(
        kernel,
        out_shape=jax.ShapeDtypeStruct((B, 1, 2 * KC), jnp.float32),
        grid=(B, nhw),
        in_specs=[
            pl.BlockSpec((1, Cin, HC), chunk),
            pl.BlockSpec((1, Cin, HC), chunk),
            pl.BlockSpec((1, 1, HC), chunk),
            pl.BlockSpec((Cin, hid), const2),
            pl.BlockSpec((Cin, hid), const2),
            pl.BlockSpec((hid, KC), const2),
            pl.BlockSpec((1, KC), const2),
            pl.BlockSpec((Cin, hid), const2),
            pl.BlockSpec((Cin, hid), const2),
            pl.BlockSpec((hid, KC), const2),
            pl.BlockSpec((1, KC), const2),
        ],
        out_specs=pl.BlockSpec((1, 1, 2 * KC), lambda i, j: (i, 0, 0)),
        scratch_shapes=[pltpu.VMEM((1, Cin), jnp.float32),
                        pltpu.VMEM((1, Cin), jnp.float32)],
        compiler_params=pltpu.CompilerParams(
            dimension_semantics=("parallel", "arbitrary"),
            vmem_limit_bytes=vmem_limit),
    )(c2, b2, m2, w11a, w11b, w12t, b12, w21a, w21b, w22t, b22)
    packed = packed[:, 0, :]                                     # (B, 2*K*Cin)
    return packed[:, :KC], packed[:, KC:]


# ---------------------------------------------------------------------------
# Kernel 2: fused (center+boundary) per-batch dynamic conv
#   - grid = (branch, batch, output row-band), all "parallel"
#   - taps formed in VMEM from the row-flattened padded image (lane slices)
#   - folded MXU matmul (or kh row-group matmuls when the slab is large)
# ---------------------------------------------------------------------------
def _dyn_conv_kernel(kh, kw, dil, Wp, nb, span, fold_rows,
                     theta_ref, x_ref, bias_ref, aw_ref, o_ref):
    # theta_ref: (1, 1, K, Tt*cp)    f32  (theta tiled across taps, Cin padded)
    # x_ref:     (1, 1, cp, L)       bf16 (row-flat padded image, band-invariant)
    # bias_ref:  (1, 1, Cout, 1)     f32
    # aw_ref:    (K, Cout, Tt*cp)    bf16 (grid-invariant, single-buffered)
    # o_ref:     (1, 1, Cout, span)  out dtype, span = band_rows * Wp
    Kk = aw_ref.shape[0]
    cp = x_ref.shape[2]
    th = theta_ref[0, 0]                                   # (K, Tt*cp)
    aw = aw_ref[...].astype(jnp.float32)                   # (K, Cout, Tt*cp)

    # fused weight (f32 accumulation over K, bf16 for the MXU):
    # wf[co, t*cp+ci] = sum_k theta[k, ci] * AW[k, co, ci, t]
    wf = aw[0] * th[0][None, :]
    for k in range(1, Kk):
        wf = wf + aw[k] * th[k][None, :]
    wf = wf.astype(jnp.bfloat16)                           # (Cout, Tt*cp)

    # output row-band base offset in the row-flat padded image.
    if nb == 1:
        base = 0                                           # static slices
    else:
        base = pl.multiple_of(pl.program_id(2) * span, 128)

    def tap(dy, dx):
        # every (dy, dx) tap is a lane-shifted window of the row-flat image.
        return x_ref[0, 0, :, pl.ds(base + dil * (dy * Wp + dx), span)]

    if fold_rows:
        # kh row-group matmuls (contraction kw*cp), f32 accumulate: ~3x less
        # im2col VMEM than the full 9-tap slab (matters inside v7x's 64 MiB).
        acc = None
        for dy in range(kh):
            slab = jnp.concatenate([tap(dy, dx) for dx in range(kw)], axis=0)
            wro = wf[:, dy * kw * cp:(dy + 1) * kw * cp]
            part = jnp.dot(wro, slab, preferred_element_type=jnp.float32)
            acc = part if acc is None else acc + part
    else:
        # single folded MXU matmul over the full kh*kw*cp contraction.
        xcol = jnp.concatenate(
            [tap(dy, dx) for dy in range(kh) for dx in range(kw)], axis=0)
        acc = jnp.dot(wf, xcol, preferred_element_type=jnp.float32)

    o_ref[0, 0] = (acc + bias_ref[0, 0]).astype(o_ref.dtype)


def _dyn_conv(theta_t, x_flat, bias, aw2, *, kh, kw, dil, Wp, oh,
              vmem_limit, out_dtype):
    G, B, Kk, TC = theta_t.shape
    cp, L = x_flat.shape[2], x_flat.shape[3]
    Co = aw2.shape[1]

    bh, nb = _pick_band(oh, Wp, cp, Co, kh, kw)
    span = bh * Wp
    fold_rows = kh * kw * cp * span * 2 > _IM2COL_BUDGET_BYTES

    # TODO(synk): for very large images the full row-flat input block is still
    # resident per (branch, batch); move to a manual halo-band DMA
    # (memory_space=pl.ANY + pltpu.make_async_copy) to tile the input as well.
    kernel = partial(_dyn_conv_kernel, kh, kw, dil, Wp, nb, span, fold_rows)
    return pl.pallas_call(
        kernel,
        out_shape=jax.ShapeDtypeStruct((G, B, Co, nb * span), out_dtype),
        grid=(G, B, nb),                 # branch axis leads (v7x: 2 TCs busy)
        in_specs=[
            pl.BlockSpec((1, 1, Kk, TC), lambda g, b, s: (g, b, 0, 0)),
            pl.BlockSpec((1, 1, cp, L), lambda g, b, s: (g, b, 0, 0)),
            pl.BlockSpec((1, 1, Co, 1), lambda g, b, s: (g, b, 0, 0)),
            # grid-invariant anchored weights: constant block index and
            # single-buffered -> DMA'd once, no wasted second VMEM buffer.
            pl.BlockSpec((Kk, Co, TC), lambda g, b, s: (0, 0, 0),
                         pipeline_mode=pl.Buffered(1)),
        ],
        out_specs=pl.BlockSpec((1, 1, Co, span), lambda g, b, s: (g, b, 0, s)),
        compiler_params=pltpu.CompilerParams(
            dimension_semantics=("parallel", "parallel", "parallel"),
            vmem_limit_bytes=vmem_limit),
    )(theta_t, x_flat, bias, aw2)


# ---------------------------------------------------------------------------
# Glue: parameter setup, full CCM forward
# ---------------------------------------------------------------------------
def init_params(key, Cin, Cout, K, kh, kw):
    in2 = 2 * Cin                       # M_CFG sees concat(center, boundary)
    hid = in2 if in2 != 3 else K
    kc = int(K * in2 * 0.5)             # == K * Cin
    ks = jax.random.split(key, 5)

    def kaiming_in(k, shape, fan_in):
        return jax.random.normal(k, shape, jnp.float32) * math.sqrt(2.0 / fan_in)

    theta = {
        "w11": kaiming_in(ks[0], (hid, in2), in2),
        "w12": kaiming_in(ks[1], (kc, hid), hid),
        "b12": jnp.zeros((kc,), jnp.float32),
        "w21": kaiming_in(ks[2], (hid, in2), in2),
        "w22": kaiming_in(ks[3], (kc, hid), hid),
        "b22": jnp.zeros((kc,), jnp.float32),
    }
    # kaiming_normal_(fan_out, relu) per K slice
    aw = (jax.random.normal(ks[4], (K, Cout, Cin, kh, kw), jnp.float32)
          * math.sqrt(2.0 / (Cout * kh * kw)))
    return {"theta": theta,
            "anchored_weight": aw,
            "anchored_bias": jnp.zeros((K, Cout), jnp.float32)}


def ccm_forward(params, center, boundary, mask, *, K, kernel_size=(3, 3),
                stride=1, padding=1, dilation=1, T=34, out_dtype=jnp.float32):
    B, Cin, H, W = center.shape
    Cout = params["anchored_weight"].shape[1]
    kh, kw = kernel_size
    assert stride == 1, "stride > 1 not implemented in the Pallas conv path"
    # TODO(synk): grouped conv (groups > 1) not implemented (module default 1).

    vmem_limit = _vmem_limit_bytes()

    # ONE bf16 cast of the activations feeds BOTH kernels (halves pooled-read
    # traffic; the padded conv copy below is bf16 instead of f32).
    xb = jnp.stack([center, boundary], axis=0).astype(jnp.bfloat16)  # (2,B,Cin,H,W)
    mb = mask.astype(jnp.bfloat16)

    # ---- M_CFG: per-batch mixing coefficients ------------------------------
    theta_c, theta_b = m_cfg_forward(xb[0], xb[1], mb, params["theta"], T,
                                     vmem_limit)
    theta2 = jnp.stack([theta_c.reshape(B, K, Cin),
                        theta_b.reshape(B, K, Cin)], axis=0)       # (2,B,K,Cin)

    # dynamic bias folded in the wrapper (tiny: 2*B*K*Cout flops), unpadded theta.
    bias = jnp.einsum("gbk,ko->gbo", jnp.mean(theta2, axis=3),
                      params["anchored_bias"])[..., None]          # (2,B,Cout,1)

    # pad Cin to the bf16 sublane packing so every tap slab is tile-aligned
    # (zero channels are exact: both theta and the activations are zero there).
    cp = -(-Cin // _SUBLANE_PACK) * _SUBLANE_PACK
    Tt = kh * kw

    # theta tiled across the kh*kw taps so the kernel mixes weights with pure
    # broadcasts: index t*cp+ci -> theta[k, ci].
    theta_p = jnp.pad(theta2, ((0, 0), (0, 0), (0, 0), (0, cp - Cin)))
    theta_t = jnp.broadcast_to(theta_p[:, :, :, None, :],
                               (2, B, K, Tt, cp)).reshape(2, B, K, Tt * cp)

    # anchored weight (K,Cout,Cin,kh,kw) -> (K,Cout,Tt*cp), tap-major, bf16.
    awp = jnp.pad(params["anchored_weight"],
                  ((0, 0), (0, 0), (0, cp - Cin), (0, 0), (0, 0)))
    aw2 = jnp.transpose(awp, (0, 1, 3, 4, 2)).reshape(K, Cout, Tt * cp)
    aw2 = aw2.astype(jnp.bfloat16)

    # ---- activations: ONE flattened padded bf16 copy per branch ------------
    xpad = jnp.pad(xb, ((0, 0), (0, 0), (0, cp - Cin),
                        (padding, padding), (padding, padding)))
    Hp, Wp = xpad.shape[-2:]
    oh = H + 2 * padding - dilation * (kh - 1)
    ow = W + 2 * padding - dilation * (kw - 1)
    tail = dilation * (kw - 1)          # keeps the last tap's window in-bounds
    x_flat = xpad.reshape(2, B, cp, Hp * Wp)
    x_flat = jnp.pad(x_flat, ((0, 0), (0, 0), (0, 0), (0, tail)))

    out = _dyn_conv(theta_t, x_flat, bias, aw2, kh=kh, kw=kw, dil=dilation,
                    Wp=Wp, oh=oh, vmem_limit=vmem_limit,
                    out_dtype=out_dtype)                   # (2,B,Co,oh*Wp)
    # drop the kw-1 wrap-around columns of the row-flattened free dim.
    out = out.reshape(2, B, Cout, oh, Wp)[..., :ow]
    return out[0], out[1]


# ---------------------------------------------------------------------------
# Pure-JAX reference for verification
# ---------------------------------------------------------------------------
def ref_ccm(params, center, boundary, mask, *, K, kernel_size, stride,
            padding, dilation, T):
    p = params["theta"]
    B, Cin, H, W = center.shape
    x = jnp.concatenate([center, boundary], axis=1) * mask
    pooled = jnp.mean(x, axis=(2, 3))

    def branch(w1, w2, b2):
        h = (pooled @ w1.T) * _BN_SCALE
        h = jnp.maximum(h, 0.0)
        z = (h @ w2.T + b2) * _BN_SCALE
        return jax.nn.softmax(z / T, axis=1)

    tc = branch(p["w11"], p["w12"], p["b12"])
    tb = branch(p["w21"], p["w22"], p["b22"])
    AW = params["anchored_weight"]
    Ab = params["anchored_bias"]
    kh, kw = kernel_size

    def conv_branch(theta, xin):
        th = theta.reshape(B, K, Cin)
        Wd = jnp.einsum('bkc,kocij->bocij', th, AW,
                        precision=jax.lax.Precision.HIGHEST)
        bias = jnp.mean(th, axis=2) @ Ab
        outs = []
        for b in range(B):
            o = jax.lax.conv_general_dilated(
                xin[b:b + 1], Wd[b],
                window_strides=(stride, stride),
                padding=((padding, padding), (padding, padding)),
                rhs_dilation=(dilation, dilation),
                dimension_numbers=('NCHW', 'OIHW', 'NCHW'),
                precision=jax.lax.Precision.HIGHEST)
            outs.append(o[0] + bias[b][:, None, None])
        return jnp.stack(outs)

    return conv_branch(tc, center), conv_branch(tb, boundary)


if __name__ == "__main__":
    B, Cin, Cout, H, W = 2, 4, 8, 16, 16
    K, T = 3, 34
    kh, kw = 3, 3

    key = jax.random.PRNGKey(0)
    k1, k2, k3, kp = jax.random.split(key, 4)
    center = jax.random.normal(k1, (B, Cin, H, W), jnp.float32)
    boundary = jax.random.normal(k2, (B, Cin, H, W), jnp.float32)
    mask = (jax.random.uniform(k3, (B, 1, H, W)) > 0.5).astype(jnp.float32)
    params = init_params(kp, Cin, Cout, K, kh, kw)

    out_c, out_b = ccm_forward(params, center, boundary, mask, K=K,
                               kernel_size=(kh, kw), stride=1, padding=1,
                               dilation=1, T=T)
    jax.block_until_ready((out_c, out_b))

    ref_c, ref_b = ref_ccm(params, center, boundary, mask, K=K,
                           kernel_size=(kh, kw), stride=1, padding=1,
                           dilation=1, T=T)
    assert out_c.shape == (B, Cout, H, W) and out_b.shape == (B, Cout, H, W)
    # bf16 MXU operands / bf16-stored anchored weights (f32 accumulation)
    # -> slightly looser tolerance than a pure-f32 path.
    assert bool(jnp.allclose(out_c.astype(jnp.float32), ref_c,
                             rtol=1e-2, atol=5e-3))
    assert bool(jnp.allclose(out_b.astype(jnp.float32), ref_b,
                             rtol=1e-2, atol=5e-3))
    print("KERNEL_OK")
</pallas_src>

<mosaic_0001>
module attributes {stable_mosaic.version = 11 : i64} {
  func.func @_theta_kernel(%arg0: i32, %arg1: i32, %arg2: memref<1x4x256xbf16, #tpu.memory_space<vmem>>, %arg3: memref<1x4x256xbf16, #tpu.memory_space<vmem>>, %arg4: memref<1x1x256xbf16, #tpu.memory_space<vmem>>, %arg5: memref<4x8xf32, #tpu.memory_space<vmem>>, %arg6: memref<4x8xf32, #tpu.memory_space<vmem>>, %arg7: memref<8x12xf32, #tpu.memory_space<vmem>>, %arg8: memref<1x12xf32, #tpu.memory_space<vmem>>, %arg9: memref<4x8xf32, #tpu.memory_space<vmem>>, %arg10: memref<4x8xf32, #tpu.memory_space<vmem>>, %arg11: memref<8x12xf32, #tpu.memory_space<vmem>>, %arg12: memref<1x12xf32, #tpu.memory_space<vmem>>, %arg13: memref<1x1x24xf32, #tpu.memory_space<vmem>>, %arg14: memref<1x4xf32, #tpu.memory_space<vmem>>, %arg15: memref<1x4xf32, #tpu.memory_space<vmem>>) attributes {dimension_semantics = [#tpu.dimension_semantics<parallel>, #tpu.dimension_semantics<arbitrary>], iteration_bounds = array<i64: 2, 1>, scalar_prefetch = 0 : i64, scratch_operands = 2 : i64, tpu.core_type = #tpu.core_type<tc>, window_params = [{transform_indices = @transform_0, window_bounds = array<i64: 1, 4, 256>}, {transform_indices = @transform_1, window_bounds = array<i64: 1, 4, 256>}, {transform_indices = @transform_2, window_bounds = array<i64: 1, 1, 256>}, {pipeline_mode = #tpu.pipeline_mode<synchronous>, transform_indices = @transform_3, window_bounds = array<i64: 4, 8>}, {pipeline_mode = #tpu.pipeline_mode<synchronous>, transform_indices = @transform_4, window_bounds = array<i64: 4, 8>}, {pipeline_mode = #tpu.pipeline_mode<synchronous>, transform_indices = @transform_5, window_bounds = array<i64: 8, 12>}, {pipeline_mode = #tpu.pipeline_mode<synchronous>, transform_indices = @transform_6, window_bounds = array<i64: 1, 12>}, {pipeline_mode = #tpu.pipeline_mode<synchronous>, transform_indices = @transform_7, window_bounds = array<i64: 4, 8>}, {pipeline_mode = #tpu.pipeline_mode<synchronous>, transform_indices = @transform_8, window_bounds = array<i64: 4, 8>}, {pipeline_mode = #tpu.pipeline_mode<synchronous>, transform_indices = @transform_9, window_bounds = array<i64: 8, 12>}, {pipeline_mode = #tpu.pipeline_mode<synchronous>, transform_indices = @transform_10, window_bounds = array<i64: 1, 12>}, {transform_indices = @transform_11, window_bounds = array<i64: 1, 1, 24>}]} {
    %c0_i32 = arith.constant 0 : i32
    %0 = arith.cmpi eq, %arg1, %c0_i32 : i32
    %1 = arith.extui %0 : i1 to i32
    %c0_i32_0 = arith.constant 0 : i32
    %2 = arith.cmpi ne, %1, %c0_i32_0 : i32
    scf.if %2 {
      %cst_20 = arith.constant 0.000000e+00 : f32
      %24 = vector.broadcast %cst_20 : f32 to vector<1x4xf32>
      %c0_21 = arith.constant 0 : index
      %c0_22 = arith.constant 0 : index
      %25 = vector.load %arg14[%c0_21, %c0_22] : memref<1x4xf32, #tpu.memory_space<vmem>>, vector<1x4xf32>
      tpu.vector_store %arg14[%c0_21, %c0_22], %24 {strides = array<i32>} : memref<1x4xf32, #tpu.memory_space<vmem>>, vector<1x4xf32>,
      %cst_23 = arith.constant 0.000000e+00 : f32
      %26 = vector.broadcast %cst_23 : f32 to vector<1x4xf32>
      %c0_24 = arith.constant 0 : index
      %c0_25 = arith.constant 0 : index
      %27 = vector.load %arg15[%c0_24, %c0_25] : memref<1x4xf32, #tpu.memory_space<vmem>>, vector<1x4xf32>
      tpu.vector_store %arg15[%c0_24, %c0_25], %26 {strides = array<i32>} : memref<1x4xf32, #tpu.memory_space<vmem>>, vector<1x4xf32>,
    } else {
    }
    %c0 = arith.constant 0 : index
    %c0_1 = arith.constant 0 : index
    %c0_2 = arith.constant 0 : index
    %3 = vector.load %arg4[%c0, %c0_1, %c0_2] : memref<1x1x256xbf16, #tpu.memory_space<vmem>>, vector<1x1x256xbf16>
    %4 = arith.extf %3 : vector<1x1x256xbf16> to vector<1x1x256xf32>
    %c0_3 = arith.constant 0 : index
    %c0_4 = arith.constant 0 : index
    %5 = vector.load %arg14[%c0_3, %c0_4] : memref<1x4xf32, #tpu.memory_space<vmem>>, vector<1x4xf32>
    %c0_5 = arith.constant 0 : index
    %c0_6 = arith.constant 0 : index
    %c0_7 = arith.constant 0 : index
    %6 = vector.load %arg2[%c0_5, %c0_6, %c0_7] : memref<1x4x256xbf16, #tpu.memory_space<vmem>>, vector<1x4x256xbf16>
    %7 = arith.extf %6 : vector<1x4x256xbf16> to vector<1x4x256xf32>
    %8 = vector.broadcast %4 : vector<1x1x256xf32> to vector<1x4x256xf32>
    %9 = arith.mulf %7, %8 : vector<1x4x256xf32>
    %cst = arith.constant dense<0.000000e+00> : vector<1x4xf32>
    %10 = vector.multi_reduction <add>, %9, %cst [2] : vector<1x4x256xf32> to vector<1x4xf32>
    %11 = arith.addf %5, %10 : vector<1x4xf32>
    %c0_8 = arith.constant 0 : index
    %c0_9 = arith.constant 0 : index
    %12 = vector.load %arg14[%c0_8, %c0_9] : memref<1x4xf32, #tpu.memory_space<vmem>>, vector<1x4xf32>
    tpu.vector_store %arg14[%c0_8, %c0_9], %11 {strides = array<i32>} : memref<1x4xf32, #tpu.memory_space<vmem>>, vector<1x4xf32>,
    %c0_10 = arith.constant 0 : index
    %c0_11 = arith.constant 0 : index
    %13 = vector.load %arg15[%c0_10, %c0_11] : memref<1x4xf32, #tpu.memory_space<vmem>>, vector<1x4xf32>
    %c0_12 = arith.constant 0 : index
    %c0_13 = arith.constant 0 : index
    %c0_14 = arith.constant 0 : index
    %14 = vector.load %arg3[%c0_12, %c0_13, %c0_14] : memref<1x4x256xbf16, #tpu.memory_space<vmem>>, vector<1x4x256xbf16>
    %15 = arith.extf %14 : vector<1x4x256xbf16> to vector<1x4x256xf32>
    %16 = vector.broadcast %4 : vector<1x1x256xf32> to vector<1x4x256xf32>
    %17 = arith.mulf %15, %16 : vector<1x4x256xf32>
    %cst_15 = arith.constant dense<0.000000e+00> : vector<1x4xf32>
    %18 = vector.multi_reduction <add>, %17, %cst_15 [2] : vector<1x4x256xf32> to vector<1x4xf32>
    %19 = arith.addf %13, %18 : vector<1x4xf32>
    %c0_16 = arith.constant 0 : index
    %c0_17 = arith.constant 0 : index
    %20 = vector.load %arg15[%c0_16, %c0_17] : memref<1x4xf32, #tpu.memory_space<vmem>>, vector<1x4xf32>
    tpu.vector_store %arg15[%c0_16, %c0_17], %19 {strides = array<i32>} : memref<1x4xf32, #tpu.memory_space<vmem>>, vector<1x4xf32>,
    %c0_i32_18 = arith.constant 0 : i32
    %21 = arith.cmpi eq, %arg1, %c0_i32_18 : i32
    %22 = arith.extui %21 : i1 to i32
    %c0_i32_19 = arith.constant 0 : i32
    %23 = arith.cmpi ne, %22, %c0_i32_19 : i32
    scf.if %23 {
      %c0_20 = arith.constant 0 : index
      %c0_21 = arith.constant 0 : index
      %24 = vector.load %arg14[%c0_20, %c0_21] : memref<1x4xf32, #tpu.memory_space<vmem>>, vector<1x4xf32>
      %cst_22 = arith.constant 3.906250e-03 : f32
      %25 = vector.broadcast %cst_22 : f32 to vector<1x4xf32>
      %26 = arith.mulf %24, %25 : vector<1x4xf32>
      %c0_23 = arith.constant 0 : index
      %c0_24 = arith.constant 0 : index
      %27 = vector.load %arg15[%c0_23, %c0_24] : memref<1x4xf32, #tpu.memory_space<vmem>>, vector<1x4xf32>
      %cst_25 = arith.constant 3.906250e-03 : f32
      %28 = vector.broadcast %cst_25 : f32 to vector<1x4xf32>
      %29 = arith.mulf %27, %28 : vector<1x4xf32>
      %c0_26 = arith.constant 0 : index
      %c0_27 = arith.constant 0 : index
      %30 = vector.load %arg5[%c0_26, %c0_27] : memref<4x8xf32, #tpu.memory_space<vmem>>, vector<4x8xf32>
      %c0_28 = arith.constant 0 : index
      %c0_29 = arith.constant 0 : index
      %31 = vector.load %arg6[%c0_28, %c0_29] : memref<4x8xf32, #tpu.memory_space<vmem>>, vector<4x8xf32>
      %c0_30 = arith.constant 0 : index
      %c0_31 = arith.constant 0 : index
      %32 = vector.load %arg7[%c0_30, %c0_31] : memref<8x12xf32, #tpu.memory_space<vmem>>, vector<8x12xf32>
      %c0_32 = arith.constant 0 : index
      %c0_33 = arith.constant 0 : index
      %33 = vector.load %arg8[%c0_32, %c0_33] : memref<1x12xf32, #tpu.memory_space<vmem>>, vector<1x12xf32>
      %cst_34 = arith.constant dense<0.000000e+00> : vector<1x8xf32>
      %34 = tpu.matmul %26, %30, %cst_34 {dimension_numbers = #tpu.dot_dimension_numbers<[1], [0], [0], [1], [0, 0, 1, 1], [], []>} : vector<1x4xf32>, vector<4x8xf32>, vector<1x8xf32> -> vector<1x8xf32>
      %cst_35 = arith.constant dense<0.000000e+00> : vector<1x8xf32>
      %35 = tpu.matmul %29, %31, %cst_35 {dimension_numbers = #tpu.dot_dimension_numbers<[1], [0], [0], [1], [0, 0, 1, 1], [], []>} : vector<1x4xf32>, vector<4x8xf32>, vector<1x8xf32> -> vector<1x8xf32>
      %36 = arith.addf %34, %35 : vector<1x8xf32>
      %cst_36 = arith.constant 0.999994993 : f32
      %37 = vector.broadcast %cst_36 : f32 to vector<1x8xf32>
      %38 = arith.mulf %36, %37 : vector<1x8xf32>
      %cst_37 = arith.constant 0.000000e+00 : f32
      %39 = vector.broadcast %cst_37 : f32 to vector<1x8xf32>
      %40 = arith.maximumf %38, %39 : vector<1x8xf32>
      %cst_38 = arith.constant dense<0.000000e+00> : vector<1x12xf32>
      %41 = tpu.matmul %40, %32, %cst_38 {dimension_numbers = #tpu.dot_dimension_numbers<[1], [0], [0], [1], [0, 0, 1, 1], [], []>} : vector<1x8xf32>, vector<8x12xf32>, vector<1x12xf32> -> vector<1x12xf32>
      %42 = arith.addf %41, %33 : vector<1x12xf32>
      %cst_39 = arith.constant 0.999994993 : f32
      %43 = vector.broadcast %cst_39 : f32 to vector<1x12xf32>
      %44 = arith.mulf %42, %43 : vector<1x12xf32>
      %cst_40 = arith.constant 0.0294117648 : f32
      %45 = vector.broadcast %cst_40 : f32 to vector<1x12xf32>
      %46 = arith.mulf %44, %45 : vector<1x12xf32>
      %cst_41 = arith.constant dense<0xFF800000> : vector<1xf32>
      %47 = vector.multi_reduction <maximumf>, %46, %cst_41 [1] : vector<1x12xf32> to vector<1xf32>
      %48 = vector.shape_cast %47 : vector<1xf32> to vector<1x1xf32>
      %49 = vector.broadcast %48 : vector<1x1xf32> to vector<1x12xf32>
      %50 = arith.subf %46, %49 : vector<1x12xf32>
      %51 = math.exp %50 : vector<1x12xf32>
      %cst_42 = arith.constant dense<0.000000e+00> : vector<1xf32>
      %52 = vector.multi_reduction <add>, %51, %cst_42 [1] : vector<1x12xf32> to vector<1xf32>
      %53 = vector.shape_cast %52 : vector<1xf32> to vector<1x1xf32>
      %54 = vector.broadcast %53 : vector<1x1xf32> to vector<1x12xf32>
      %55 = arith.divf %51, %54 : vector<1x12xf32>
      %c0_43 = arith.constant 0 : index
      %c0_44 = arith.constant 0 : index
      %56 = vector.load %arg9[%c0_43, %c0_44] : memref<4x8xf32, #tpu.memory_space<vmem>>, vector<4x8xf32>
      %c0_45 = arith.constant 0 : index
      %c0_46 = arith.constant 0 : index
      %57 = vector.load %arg10[%c0_45, %c0_46] : memref<4x8xf32, #tpu.memory_space<vmem>>, vector<4x8xf32>
      %c0_47 = arith.constant 0 : index
      %c0_48 = arith.constant 0 : index
      %58 = vector.load %arg11[%c0_47, %c0_48] : memref<8x12xf32, #tpu.memory_space<vmem>>, vector<8x12xf32>
      %c0_49 = arith.constant 0 : index
      %c0_50 = arith.constant 0 : index
      %59 = vector.load %arg12[%c0_49, %c0_50] : memref<1x12xf32, #tpu.memory_space<vmem>>, vector<1x12xf32>
      %cst_51 = arith.constant dense<0.000000e+00> : vector<1x8xf32>
      %60 = tpu.matmul %26, %56, %cst_51 {dimension_numbers = #tpu.dot_dimension_numbers<[1], [0], [0], [1], [0, 0, 1, 1], [], []>} : vector<1x4xf32>, vector<4x8xf32>, vector<1x8xf32> -> vector<1x8xf32>
      %cst_52 = arith.constant dense<0.000000e+00> : vector<1x8xf32>
      %61 = tpu.matmul %29, %57, %cst_52 {dimension_numbers = #tpu.dot_dimension_numbers<[1], [0], [0], [1], [0, 0, 1, 1], [], []>} : vector<1x4xf32>, vector<4x8xf32>, vector<1x8xf32> -> vector<1x8xf32>
      %62 = arith.addf %60, %61 : vector<1x8xf32>
      %cst_53 = arith.constant 0.999994993 : f32
      %63 = vector.broadcast %cst_53 : f32 to vector<1x8xf32>
      %64 = arith.mulf %62, %63 : vector<1x8xf32>
      %cst_54 = arith.constant 0.000000e+00 : f32
      %65 = vector.broadcast %cst_54 : f32 to vector<1x8xf32>
      %66 = arith.maximumf %64, %65 : vector<1x8xf32>
      %cst_55 = arith.constant dense<0.000000e+00> : vector<1x12xf32>
      %67 = tpu.matmul %66, %58, %cst_55 {dimension_numbers = #tpu.dot_dimension_numbers<[1], [0], [0], [1], [0, 0, 1, 1], [], []>} : vector<1x8xf32>, vector<8x12xf32>, vector<1x12xf32> -> vector<1x12xf32>
      %68 = arith.addf %67, %59 : vector<1x12xf32>
      %cst_56 = arith.constant 0.999994993 : f32
      %69 = vector.broadcast %cst_56 : f32 to vector<1x12xf32>
      %70 = arith.mulf %68, %69 : vector<1x12xf32>
      %cst_57 = arith.constant 0.0294117648 : f32
      %71 = vector.broadcast %cst_57 : f32 to vector<1x12xf32>
      %72 = arith.mulf %70, %71 : vector<1x12xf32>
      %cst_58 = arith.constant dense<0xFF800000> : vector<1xf32>
      %73 = vector.multi_reduction <maximumf>, %72, %cst_58 [1] : vector<1x12xf32> to vector<1xf32>
      %74 = vector.shape_cast %73 : vector<1xf32> to vector<1x1xf32>
      %75 = vector.broadcast %74 : vector<1x1xf32> to vector<1x12xf32>
      %76 = arith.subf %72, %75 : vector<1x12xf32>
      %77 = math.exp %76 : vector<1x12xf32>
      %cst_59 = arith.constant dense<0.000000e+00> : vector<1xf32>
      %78 = vector.multi_reduction <add>, %77, %cst_59 [1] : vector<1x12xf32> to vector<1xf32>
      %79 = vector.shape_cast %78 : vector<1xf32> to vector<1x1xf32>
      %80 = vector.broadcast %79 : vector<1x1xf32> to vector<1x12xf32>
      %81 = arith.divf %77, %80 : vector<1x12xf32>
      %82 = tpu.concatenate %55, %81 in 1 : vector<1x12xf32>, vector<1x12xf32> -> vector<1x24xf32>
      %c0_60 = arith.constant 0 : index
      %c0_61 = arith.constant 0 : index
      %c0_62 = arith.constant 0 : index
      %83 = vector.load %arg13[%c0_60, %c0_61, %c0_62] : memref<1x1x24xf32, #tpu.memory_space<vmem>>, vector<1x1x24xf32>
      %84 = vector.shape_cast %83 : vector<1x1x24xf32> to vector<1x24xf32>
      %85 = vector.shape_cast %82 : vector<1x24xf32> to vector<1x1x24xf32>
      tpu.vector_store %arg13[%c0_60, %c0_61, %c0_62], %85 {strides = array<i32>} : memref<1x1x24xf32, #tpu.memory_space<vmem>>, vector<1x1x24xf32>,
    } else {
    }
    return
  }
  func.func @transform_0(%arg0: i32, %arg1: i32) -> (i32, i32, i32) {
    %c0_i32 = arith.constant 0 : i32
    %c0_i32_0 = arith.constant 0 : i32
    return %arg0, %c0_i32, %arg1 : i32, i32, i32
  }
  func.func @transform_1(%arg0: i32, %arg1: i32) -> (i32, i32, i32) {
    %c0_i32 = arith.constant 0 : i32
    %c0_i32_0 = arith.constant 0 : i32
    return %arg0, %c0_i32, %arg1 : i32, i32, i32
  }
  func.func @transform_2(%arg0: i32, %arg1: i32) -> (i32, i32, i32) {
    %c0_i32 = arith.constant 0 : i32
    %c0_i32_0 = arith.constant 0 : i32
    return %arg0, %c0_i32, %arg1 : i32, i32, i32
  }
  func.func @transform_3(%arg0: i32, %arg1: i32) -> (i32, i32) {
    %c0_i32 = arith.constant 0 : i32
    %c0_i32_0 = arith.constant 0 : i32
    %c0_i32_1 = arith.constant 0 : i32
    return %c0_i32, %c0_i32_0 : i32, i32
  }
  func.func @transform_4(%arg0: i32, %arg1: i32) -> (i32, i32) {
    %c0_i32 = arith.constant 0 : i32
    %c0_i32_0 = arith.constant 0 : i32
    %c0_i32_1 = arith.constant 0 : i32
    return %c0_i32, %c0_i32_0 : i32, i32
  }
  func.func @transform_5(%arg0: i32, %arg1: i32) -> (i32, i32) {
    %c0_i32 = arith.constant 0 : i32
    %c0_i32_0 = arith.constant 0 : i32
    %c0_i32_1 = arith.constant 0 : i32
    return %c0_i32, %c0_i32_0 : i32, i32
  }
  func.func @transform_6(%arg0: i32, %arg1: i32) -> (i32, i32) {
    %c0_i32 = arith.constant 0 : i32
    %c0_i32_0 = arith.constant 0 : i32
    %c0_i32_1 = arith.constant 0 : i32
    return %c0_i32, %c0_i32_0 : i32, i32
  }
  func.func @transform_7(%arg0: i32, %arg1: i32) -> (i32, i32) {
    %c0_i32 = arith.constant 0 : i32
    %c0_i32_0 = arith.constant 0 : i32
    %c0_i32_1 = arith.constant 0 : i32
    return %c0_i32, %c0_i32_0 : i32, i32
  }
  func.func @transform_8(%arg0: i32, %arg1: i32) -> (i32, i32) {
    %c0_i32 = arith.constant 0 : i32
    %c0_i32_0 = arith.constant 0 : i32
    %c0_i32_1 = arith.constant 0 : i32
    return %c0_i32, %c0_i32_0 : i32, i32
  }
  func.func @transform_9(%arg0: i32, %arg1: i32) -> (i32, i32) {
    %c0_i32 = arith.constant 0 : i32
    %c0_i32_0 = arith.constant 0 : i32
    %c0_i32_1 = arith.constant 0 : i32
    return %c0_i32, %c0_i32_0 : i32, i32
  }
  func.func @transform_10(%arg0: i32, %arg1: i32) -> (i32, i32) {
    %c0_i32 = arith.constant 0 : i32
    %c0_i32_0 = arith.constant 0 : i32
    %c0_i32_1 = arith.constant 0 : i32
    return %c0_i32, %c0_i32_0 : i32, i32
  }
  func.func @transform_11(%arg0: i32, %arg1: i32) -> (i32, i32, i32) {
    %c0_i32 = arith.constant 0 : i32
    %c0_i32_0 = arith.constant 0 : i32
    %c0_i32_1 = arith.constant 0 : i32
    return %arg0, %c0_i32, %c0_i32_0 : i32, i32, i32
  }
}

</mosaic_0001>

<llo_original>
// kernel: tpu_custom_call.1
$region0: #{tpu_custom_call.1}
  #allocation0 [shape = 'u32[]', space=smem, size = 0x4, offset = 0x4, fixed_abs, tag = 'smem constant byte address 0x4 - core index']
  #allocation1 [shape = 'u32[144,128]{1,0:T(1,128)}', space=vmem, size = 0x12000, scoped, tag = 'internal scratch']
  #allocation2 [shape = 'f32[1,4]{1,0:T(1,128)}', space=vmem, size = 0x200, scoped, tag = 'scratch operand']
  #allocation3 [shape = 'f32[1,4]{1,0:T(1,128)}', space=vmem, size = 0x200, scoped, tag = 'scratch operand']
  %s0 = inlined_call_operand.hbm [shape: bf16[2,4,256], index: 0, kind: input, shape index: {}]
  %s1 = inlined_call_operand.vmem [shape: bf16[2,4,256], index: 1, kind: input, shape index: {}]
  %s2 = inlined_call_operand.vmem [shape: bf16[2,1,256], index: 2, kind: input, shape index: {}]
  %s3 = inlined_call_operand.hbm [shape: f32[4,8], index: 3, kind: input, shape index: {}]
  %s4 = inlined_call_operand.hbm [shape: f32[4,8], index: 4, kind: input, shape index: {}]
  %s5 = inlined_call_operand.vmem [shape: f32[8,12], index: 5, kind: input, shape index: {}]
  %s6 = inlined_call_operand.hbm [shape: f32[1,12], index: 6, kind: input, shape index: {}]
  %s7 = inlined_call_operand.vmem [shape: f32[4,8], index: 7, kind: input, shape index: {}]
  %s8 = inlined_call_operand.vmem [shape: f32[4,8], index: 8, kind: input, shape index: {}]
  %s9 = inlined_call_operand.vmem [shape: f32[8,12], index: 9, kind: input, shape index: {}]
  %s10 = inlined_call_operand.vmem [shape: f32[1,12], index: 10, kind: input, shape index: {}]
  %s11 = inlined_call_operand.hbm [shape: f32[2,1,24], index: 11, kind: output, shape index: {}]
  %s12 = sld [smem:[#allocation0]]
  $region101: #{tpu_custom_call.1} parent=0
    _
  %s14 = ssub.s32 1, %s12
  %s15 = scalar_select 0, %s14, %s12
  $region1: #{tpu_custom_call.1} parent=0
    #allocation4 [shape = 'u8[4096]{0}', space=vmem, size = 0x1000, scoped, tag = 'input window, operand 0']
    #allocation5 [shape = 's32[2]{0}', space=sflag, size = 0x8, scoped, tag = 'scoped memory for tpu_custom_call.1']
    #allocation6 [shape = 's32[2]{0}', space=sflag, size = 0x8, scoped, tag = 'scoped memory for tpu_custom_call.1']
    #allocation7 [shape = 'u8[2048]{0}', space=vmem, size = 0x800, scoped, tag = 'input window, operand 3, single buffered']
    #allocation8 [shape = 's32[1]{0}', space=sflag, size = 0x4, scoped, tag = 'scoped memory for tpu_custom_call.1']
    #allocation9 [shape = 'u8[2048]{0}', space=vmem, size = 0x800, scoped, tag = 'input window, operand 4, single buffered']
    #allocation10 [shape = 'u8[512]{0}', space=vmem, size = 0x400, scoped, tag = 'input window, operand 6, single buffered']
    #allocation11 [shape = 's32[1]{0}', space=sflag, size = 0x4, scoped, tag = 'scoped memory for tpu_custom_call.1']
    #allocation12 [shape = 'u8[1024]{0}', space=vmem, size = 0x400, scoped, tag = 'output window, operand 0']
    %16 = vsyncpa [#allocation5], 0
    %s17 = scalar_lea.sflag [#allocation5], 1
    %18 = vsyncpa %s17, 0
    %19 = vsyncpa [#allocation8], 0
    %20 = vsyncpa [#allocation11], 0
    %21 = vsyncpa [#allocation6], 0
    %s22 = scalar_lea.sflag [#allocation6], 1
    %23 = vsyncpa %s22, 0
    loop: start=0, step=1, limit=4
    $region2: #{tpu_custom_call.1} parent=1 // loop_pre_header
      _
    $region3: #{tpu_custom_call.1} parent=1 // loop_header
      %s25 = sphi 0, %s29
      %p26 = scmp.ge.s32.totalorder %s25, 4
      %s32 = sphi 0, %s44
      %s33 = sphi 0, %s40
      %s34 = sphi 0, %s32
      %s35 = sphi 0, %s33
      %s36 = sphi 0, %s34
      %s37 = sphi 0, %s35
      %s49 = sphi 0, %s51
      %s52 = sphi 0, %s49
      %s53 = sphi 0, %s52
      %s69 = sphi 0, %s53
      %s77 = sphi 0, %s79
      %s80 = sphi 0, %s77
      %s81 = sphi 0, %s80
      %s97 = sphi 0, %s81
      %s105 = sphi 0, %s107
      %s108 = sphi 0, %s105
      %s109 = sphi 0, %s108
      %s125 = sphi 0, %s109
      %s129 = sphi 0, %s129
      %s131 = sphi 0, %s129
      %s132 = sphi 0, %s131
      %s146 = sphi 0, %s132
      %s150 = sphi 0, %s150
      %s152 = sphi 0, %s150
      %s153 = sphi 0, %s152
      %s167 = sphi 0, %s153
      %s171 = sphi 0, %s171
      %s173 = sphi 0, %s171
      %s174 = sphi 0, %s173
      %s188 = sphi 0, %s174
      %s192 = sphi 0, %s192
      %s194 = sphi 0, %s192
      %s195 = sphi 0, %s194
      %s209 = sphi 0, %s195
      %s213 = sphi 0, %s213
      %s215 = sphi 0, %s213
      %s216 = sphi 0, %s215
      %s230 = sphi 0, %s216
      %s234 = sphi 0, %s234
      %s236 = sphi 0, %s234
      %s237 = sphi 0, %s236
      %s251 = sphi 0, %s237
      %s255 = sphi 0, %s255
      %s257 = sphi 0, %s255
      %s258 = sphi 0, %s257
      %s272 = sphi 0, %s258
      %s276 = sphi 0, %s276
      %s278 = sphi 0, %s276
      %s279 = sphi 0, %s278
      %s293 = sphi 0, %s279
      %s299 = sphi 0, %s301
      %s302 = sphi 0, %s299
      %s303 = sphi 0, %s302
      %s319 = sphi 0, %s303
    $region4: #{tpu_custom_call.1} parent=1 // loop_header_branch
      %28 = sbr.rel (%p26) target = $region8
    $region5: #{tpu_custom_call.1} parent=1 // loop_body
      %s30 = ssub.s32 %s25, 1
      %s31 = ssub.s32 %s25, 2
      %s38 = sadd.s32 1, %s33
      %p39 = scmp.ge.s32.totalorder %s38, 1
      %s40 = scalar_select %p39, 0, %s38
      %s41 = sadd.s32 1, %s32
      %s42 = scalar_select %p39, %s41, %s32
      %p43 = scmp.ge.s32.totalorder %s42, 2
      %s44 = scalar_select %p43, 0, %s42
      %s45 = ssub.s32 %s32, %s44
      %s46 = ssub.s32 %s33, %s40
      %s47 = sor.u32 %s45, %s46
      %p48 = scmp.eq.s32.totalorder %s47, 0
      %s50 = sadd.s32 %s49, 1
      %s51 = scalar_select %p48, %s49, %s50
      %p54 = pneg %p48
      %p55 = scmp.eq.s32.totalorder %s25, 1
      %p56 = por %p54, %p55
      %p57 = scmp.ne.s32.totalorder %s49, %s52
      %p58 = scmp.eq.s32.totalorder %s25, 0
      %p59 = por %p57, %p58
      %p60 = scmp.ne.s32.totalorder %s49, %s52
      %p61 = scmp.eq.s32.totalorder %s30, 1
      %p62 = por %p60, %p61
      %p63 = scmp.ne.s32.totalorder %s52, %s53
      %p64 = scmp.eq.s32.totalorder %s30, 0
      %p65 = por %p63, %p64
      %p66 = scmp.ne.s32.totalorder %s52, %s53
      %p67 = scmp.eq.s32.totalorder %s31, 1
      %p68 = por %p66, %p67
      %p70 = scmp.ne.s32.totalorder %s53, %s69
      %p71 = scmp.eq.s32.totalorder %s31, 0
      %p72 = por %p70, %p71
      %s73 = ssub.s32 %s32, %s44
      %s74 = ssub.s32 %s33, %s40
      %s75 = sor.u32 %s73, %s74
      %p76 = scmp.eq.s32.totalorder %s75, 0
      %s78 = sadd.s32 %s77, 1
      %s79 = scalar_select %p76, %s77, %s78
      %p82 = pneg %p76
      %p83 = scmp.eq.s32.totalorder %s25, 1
      %p84 = por %p82, %p83
      %p85 = scmp.ne.s32.totalorder %s77, %s80
      %p86 = scmp.eq.s32.totalorder %s25, 0
      %p87 = por %p85, %p86
      %p88 = scmp.ne.s32.totalorder %s77, %s80
      %p89 = scmp.eq.s32.totalorder %s30, 1
      %p90 = por %p88, %p89
      %p91 = scmp.ne.s32.totalorder %s80, %s81
      %p92 = scmp.eq.s32.totalorder %s30, 0
      %p93 = por %p91, %p92
      %p94 = scmp.ne.s32.totalorder %s80, %s81
      %p95 = scmp.eq.s32.totalorder %s31, 1
      %p96 = por %p94, %p95
      %p98 = scmp.ne.s32.totalorder %s81, %s97
      %p99 = scmp.eq.s32.totalorder %s31, 0
      %p100 = por %p98, %p99
      %s101 = ssub.s32 %s32, %s44
      %s102 = ssub.s32 %s33, %s40
      %s103 = sor.u32 %s101, %s102
      %p104 = scmp.eq.s32.totalorder %s103, 0
      %s106 = sadd.s32 %s105, 1
      %s107 = scalar_select %p104, %s105, %s106
      %p110 = pneg %p104
      %p111 = scmp.eq.s32.totalorder %s25, 1
      %p112 = por %p110, %p111
      %p113 = scmp.ne.s32.totalorder %s105, %s108
      %p114 = scmp.eq.s32.totalorder %s25, 0
      %p115 = por %p113, %p114
      %p116 = scmp.ne.s32.totalorder %s105, %s108
      %p117 = scmp.eq.s32.totalorder %s30, 1
      %p118 = por %p116, %p117
      %p119 = scmp.ne.s32.totalorder %s108, %s109
      %p120 = scmp.eq.s32.totalorder %s30, 0
      %p121 = por %p119, %p120
      %p122 = scmp.ne.s32.totalorder %s108, %s109
      %p123 = scmp.eq.s32.totalorder %s31, 1
      %p124 = por %p122, %p123
      %p126 = scmp.ne.s32.totalorder %s109, %s125
      %p127 = scmp.eq.s32.totalorder %s31, 0
      %p128 = por %p126, %p127
      %s130 = sadd.s32 %s129, 1
      %p133 = scmp.eq.s32.totalorder %s25, 1
      %p134 = scmp.ne.s32.totalorder %s129, %s131
      %p135 = scmp.eq.s32.totalorder %s25, 0
      %p136 = por %p134, %p135
      %p137 = scmp.ne.s32.totalorder %s129, %s131
      %p138 = scmp.eq.s32.totalorder %s30, 1
      %p139 = por %p137, %p138
      %p140 = scmp.ne.s32.totalorder %s131, %s132
      %p141 = scmp.eq.s32.totalorder %s30, 0
      %p142 = por %p140, %p141
      %p143 = scmp.ne.s32.totalorder %s131, %s132
      %p144 = scmp.eq.s32.totalorder %s31, 1
      %p145 = por %p143, %p144
      %p147 = scmp.ne.s32.totalorder %s132, %s146
      %p148 = scmp.eq.s32.totalorder %s31, 0
      %p149 = por %p147, %p148
      %s151 = sadd.s32 %s150, 1
      %p154 = scmp.eq.s32.totalorder %s25, 1
      %p155 = scmp.ne.s32.totalorder %s150, %s152
      %p156 = scmp.eq.s32.totalorder %s25, 0
      %p157 = por %p155, %p156
      %p158 = scmp.ne.s32.totalorder %s150, %s152
      %p159 = scmp.eq.s32.totalorder %s30, 1
      %p160 = por %p158, %p159
      %p161 = scmp.ne.s32.totalorder %s152, %s153
      %p162 = scmp.eq.s32.totalorder %s30, 0
      %p163 = por %p161, %p162
      %p164 = scmp.ne.s32.totalorder %s152, %s153
      %p165 = scmp.eq.s32.totalorder %s31, 1
      %p166 = por %p164, %p165
      %p168 = scmp.ne.s32.totalorder %s153, %s167
      %p169 = scmp.eq.s32.totalorder %s31, 0
      %p170 = por %p168, %p169
      %s172 = sadd.s32 %s171, 1
      %p175 = scmp.eq.s32.totalorder %s25, 1
      %p176 = scmp.ne.s32.totalorder %s171, %s173
      %p177 = scmp.eq.s32.totalorder %s25, 0
      %p178 = por %p176, %p177
      %p179 = scmp.ne.s32.totalorder %s171, %s173
      %p180 = scmp.eq.s32.totalorder %s30, 1
      %p181 = por %p179, %p180
      %p182 = scmp.ne.s32.totalorder %s173, %s174
      %p183 = scmp.eq.s32.totalorder %s30, 0
      %p184 = por %p182, %p183
      %p185 = scmp.ne.s32.totalorder %s173, %s174
      %p186 = scmp.eq.s32.totalorder %s31, 1
      %p187 = por %p185, %p186
      %p189 = scmp.ne.s32.totalorder %s174, %s188
      %p190 = scmp.eq.s32.totalorder %s31, 0
      %p191 = por %p189, %p190
      %s193 = sadd.s32 %s192, 1
      %p196 = scmp.eq.s32.totalorder %s25, 1
      %p197 = scmp.ne.s32.totalorder %s192, %s194
      %p198 = scmp.eq.s32.totalorder %s25, 0
      %p199 = por %p197, %p198
      %p200 = scmp.ne.s32.totalorder %s192, %s194
      %p201 = scmp.eq.s32.totalorder %s30, 1
      %p202 = por %p200, %p201
      %p203 = scmp.ne.s32.totalorder %s194, %s195
      %p204 = scmp.eq.s32.totalorder %s30, 0
      %p205 = por %p203, %p204
      %p206 = scmp.ne.s32.totalorder %s194, %s195
      %p207 = scmp.eq.s32.totalorder %s31, 1
      %p208 = por %p206, %p207
      %p210 = scmp.ne.s32.totalorder %s195, %s209
      %p211 = scmp.eq.s32.totalorder %s31, 0
      %p212 = por %p210, %p211
      %s214 = sadd.s32 %s213, 1
      %p217 = scmp.eq.s32.totalorder %s25, 1
      %p218 = scmp.ne.s32.totalorder %s213, %s215
      %p219 = scmp.eq.s32.totalorder %s25, 0
      %p220 = por %p218, %p219
      %p221 = scmp.ne.s32.totalorder %s213, %s215
      %p222 = scmp.eq.s32.totalorder %s30, 1
      %p223 = por %p221, %p222
      %p224 = scmp.ne.s32.totalorder %s215, %s216
      %p225 = scmp.eq.s32.totalorder %s30, 0
      %p226 = por %p224, %p225
      %p227 = scmp.ne.s32.totalorder %s215, %s216
      %p228 = scmp.eq.s32.totalorder %s31, 1
      %p229 = por %p227, %p228
      %p231 = scmp.ne.s32.totalorder %s216, %s230
      %p232 = scmp.eq.s32.totalorder %s31, 0
      %p233 = por %p231, %p232
      %s235 = sadd.s32 %s234, 1
      %p238 = scmp.eq.s32.totalorder %s25, 1
      %p239 = scmp.ne.s32.totalorder %s234, %s236
      %p240 = scmp.eq.s32.totalorder %s25, 0
      %p241 = por %p239, %p240
      %p242 = scmp.ne.s32.totalorder %s234, %s236
      %p243 = scmp.eq.s32.totalorder %s30, 1
      %p244 = por %p242, %p243
      %p245 = scmp.ne.s32.totalorder %s236, %s237
      %p246 = scmp.eq.s32.totalorder %s30, 0
      %p247 = por %p245, %p246
      %p248 = scmp.ne.s32.totalorder %s236, %s237
      %p249 = scmp.eq.s32.totalorder %s31, 1
      %p250 = por %p248, %p249
      %p252 = scmp.ne.s32.totalorder %s237, %s251
      %p253 = scmp.eq.s32.totalorder %s31, 0
      %p254 = por %p252, %p253
      %s256 = sadd.s32 %s255, 1
      %p259 = scmp.eq.s32.totalorder %s25, 1
      %p260 = scmp.ne.s32.totalorder %s255, %s257
      %p261 = scmp.eq.s32.totalorder %s25, 0
      %p262 = por %p260, %p261
      %p263 = scmp.ne.s32.totalorder %s255, %s257
      %p264 = scmp.eq.s32.totalorder %s30, 1
      %p265 = por %p263, %p264
      %p266 = scmp.ne.s32.totalorder %s257, %s258
      %p267 = scmp.eq.s32.totalorder %s30, 0
      %p268 = por %p266, %p267
      %p269 = scmp.ne.s32.totalorder %s257, %s258
      %p270 = scmp.eq.s32.totalorder %s31, 1
      %p271 = por %p269, %p270
      %p273 = scmp.ne.s32.totalorder %s258, %s272
      %p274 = scmp.eq.s32.totalorder %s31, 0
      %p275 = por %p273, %p274
      %s277 = sadd.s32 %s276, 1
      %p280 = scmp.eq.s32.totalorder %s25, 1
      %p281 = scmp.ne.s32.totalorder %s276, %s278
      %p282 = scmp.eq.s32.totalorder %s25, 0
      %p283 = por %p281, %p282
      %p284 = scmp.ne.s32.totalorder %s276, %s278
      %p285 = scmp.eq.s32.totalorder %s30, 1
      %p286 = por %p284, %p285
      %p287 = scmp.ne.s32.totalorder %s278, %s279
      %p288 = scmp.eq.s32.totalorder %s30, 0
      %p289 = por %p287, %p288
      %p290 = scmp.ne.s32.totalorder %s278, %s279
      %p291 = scmp.eq.s32.totalorder %s31, 1
      %p292 = por %p290, %p291
      %p294 = scmp.ne.s32.totalorder %s279, %s293
      %p295 = scmp.eq.s32.totalorder %s31, 0
      %p296 = por %p294, %p295
      %s297 = ssub.s32 %s32, %s44
      %p298 = scmp.eq.s32.totalorder %s297, 0
      %s300 = sadd.s32 %s299, 1
      %s301 = scalar_select %p298, %s299, %s300
      %p304 = pneg %p298
      %p305 = scmp.eq.s32.totalorder %s25, 1
      %p306 = por %p304, %p305
      %p307 = scmp.ne.s32.totalorder %s299, %s302
      %p308 = scmp.eq.s32.totalorder %s25, 0
      %p309 = por %p307, %p308
      %p310 = scmp.ne.s32.totalorder %s299, %s302
      %p311 = scmp.eq.s32.totalorder %s30, 1
      %p312 = por %p310, %p311
      %p313 = scmp.ne.s32.totalorder %s302, %s303
      %p314 = scmp.eq.s32.totalorder %s30, 0
      %p315 = por %p313, %p314
      %p316 = scmp.ne.s32.totalorder %s302, %s303
      %p317 = scmp.eq.s32.totalorder %s31, 1
      %p318 = por %p316, %p317
      %p320 = scmp.ne.s32.totalorder %s303, %s319
      %p321 = scmp.eq.s32.totalorder %s31, 0
      %p322 = por %p320, %p321
      %p323 = scmp.le.s32.totalorder 1, %s25
      %p324 = scmp.lt.s32.totalorder %s25, 3
      %p325 = pnand %p323, %p324
      %p326 = pneg %p325
      // Predicated region
      $region9: #{tpu_custom_call.1} parent=5 // pred_check
        _
      $region10: #{tpu_custom_call.1} parent=5 // pred_check_branch
        %328 = sbr.rel (%p325) target = $region12
      $region11: #{tpu_custom_call.1} parent=5 // pred_region
        %s329 = ssub.s32 %s25, 1
        // Predicated region
        $region13: #{tpu_custom_call.1} parent=11 // pred_check
          %p330 = pneg %p142
        $region14: #{tpu_custom_call.1} parent=11 // pred_check_branch
          %332 = sbr.rel (%p330) target = $region16
        $region15: #{tpu_custom_call.1} parent=11 // pred_region
          %s334 = ssub.s32 64, 64
          %335 = vsyncadd [#allocation8], %s334
          %s337 = sshll.u32 [#allocation7], 4
          %s338 = int_to_ptr.vmem [resolvable:$true] %s337
          %340 = dma.hbm_to_vmem [thread:$0]  %s3, 64, %s338, [#allocation8]
        $region16: #{tpu_custom_call.1} parent=11 // pred_fallthru
          _
        // Predicated region
        $region17: #{tpu_custom_call.1} parent=11 // pred_check
          %p341 = pneg %p163
        $region18: #{tpu_custom_call.1} parent=11 // pred_check_branch
          %343 = sbr.rel (%p341) target = $region20
        $region19: #{tpu_custom_call.1} parent=11 // pred_region
          %s345 = ssub.s32 64, 64
          %346 = vsyncadd [#allocation8], %s345
          %s348 = sshll.u32 [#allocation9], 4
          %s349 = int_to_ptr.vmem [resolvable:$true] %s348
          %351 = dma.hbm_to_vmem [thread:$0]  %s4, 64, %s349, [#allocation8]
        $region20: #{tpu_custom_call.1} parent=11 // pred_fallthru
          _
        // Predicated region
        $region21: #{tpu_custom_call.1} parent=11 // pred_check
          %p352 = pneg %p184
        $region22: #{tpu_custom_call.1} parent=11 // pred_check_branch
          %354 = sbr.rel (%p352) target = $region24
        $region23: #{tpu_custom_call.1} parent=11 // pred_region
          _
        $region24: #{tpu_custom_call.1} parent=11 // pred_fallthru
          _
        // Predicated region
        $region25: #{tpu_custom_call.1} parent=11 // pred_check
          %p355 = pneg %p205
        $region26: #{tpu_custom_call.1} parent=11 // pred_check_branch
          %357 = sbr.rel (%p355) target = $region28
        $region27: #{tpu_custom_call.1} parent=11 // pred_region
          %s359 = ssub.s32 16, 16
          %360 = vsyncadd [#allocation11], %s359
          %s362 = sshll.u32 [#allocation10], 4
          %s363 = int_to_ptr.vmem [resolvable:$true] %s362
          %365 = dma.hbm_to_vmem [thread:$0]  %s6, 16, %s363, [#allocation11]
        $region28: #{tpu_custom_call.1} parent=11 // pred_fallthru
          _
        // Predicated region
        $region29: #{tpu_custom_call.1} parent=11 // pred_check
          %p366 = pneg %p226
        $region30: #{tpu_custom_call.1} parent=11 // pred_check_branch
          %368 = sbr.rel (%p366) target = $region32
        $region31: #{tpu_custom_call.1} parent=11 // pred_region
          _
        $region32: #{tpu_custom_call.1} parent=11 // pred_fallthru
          _
        // Predicated region
        $region33: #{tpu_custom_call.1} parent=11 // pred_check
          %p369 = pneg %p247
        $region34: #{tpu_custom_call.1} parent=11 // pred_check_branch
          %371 = sbr.rel (%p369) target = $region36
        $region35: #{tpu_custom_call.1} parent=11 // pred_region
          _
        $region36: #{tpu_custom_call.1} parent=11 // pred_fallthru
          _
        // Predicated region
        $region37: #{tpu_custom_call.1} parent=11 // pred_check
          %p372 = pneg %p268
        $region38: #{tpu_custom_call.1} parent=11 // pred_check_branch
          %374 = sbr.rel (%p372) target = $region40
        $region39: #{tpu_custom_call.1} parent=11 // pred_region
          _
        $region40: #{tpu_custom_call.1} parent=11 // pred_fallthru
          _
        // Predicated region
        $region41: #{tpu_custom_call.1} parent=11 // pred_check
          %p375 = pneg %p289
        $region42: #{tpu_custom_call.1} parent=11 // pred_check_branch
          %377 = sbr.rel (%p375) target = $region44
        $region43: #{tpu_custom_call.1} parent=11 // pred_region
          _
        $region44: #{tpu_custom_call.1} parent=11 // pred_fallthru
          _
      $region12: #{tpu_custom_call.1} parent=5 // pred_fallthru
        _
      %p378 = scmp.lt.s32.totalorder %s25, 2
      // Predicated region
      $region45: #{tpu_custom_call.1} parent=5 // pred_check
        %p379 = pneg %p378
      $region46: #{tpu_custom_call.1} parent=5 // pred_check_branch
        %381 = sbr.rel (%p379) target = $region48
      $region47: #{tpu_custom_call.1} parent=5 // pred_region
        // Predicated region
        $region49: #{tpu_custom_call.1} parent=47 // pred_check
          %p382 = pneg %p59
        $region50: #{tpu_custom_call.1} parent=47 // pred_check_branch
          %384 = sbr.rel (%p382) target = $region52
        $region51: #{tpu_custom_call.1} parent=47 // pred_region
          %s385 = sand.u32 %s49, 1
          %s386 = scalar_lea.sflag [#allocation5], %s385
          %s387 = sand.u32 %s49, 1
          %s388 = smul.addr %s387, 4
          %s389 = scalar_lea.vmem [#allocation4], %s388
          %s390 = smul.u32 2, %s33
          %s392 = ssub.s32 64, 64
          %393 = vsyncadd %s386, %s392
          %s394 = smul.addr %s32, 2
          %s395 = sadd.s32 %s390, %s394
          %s396 = smul.addr %s395, 32
          %s397 = scalar_lea.hbm %s0, %s396
          %s399 = sshll.u32 %s389, 4
          %s400 = int_to_ptr.vmem [resolvable:$true] %s399
          %402 = dma.hbm_to_vmem [thread:$0]  %s397, 64, %s400, %s386
        $region52: #{tpu_custom_call.1} parent=47 // pred_fallthru
          _
        // Predicated region
        $region53: #{tpu_custom_call.1} parent=47 // pred_check
          %p403 = pneg %p87
        $region54: #{tpu_custom_call.1} parent=47 // pred_check_branch
          %405 = sbr.rel (%p403) target = $region56
        $region55: #{tpu_custom_call.1} parent=47 // pred_region
          %s406 = smul.u32 2, %s33
          %p407 = scmp.lt.s32.totalorder %s32, 1
          %s408 = scalar_select %p407, %s32, 1
          %p409 = scmp.lt.s32.totalorder %s406, 1
          %s410 = scalar_select %p409, %s406, 1
          %s411 = smul.addr %s408, 2
          %s412 = sadd.s32 %s410, %s411
          %s413 = smul.addr %s412, 2
          %s414 = scalar_lea.vmem %s1, %s413
          %s415 = smul.u32 2, %s33
        $region56: #{tpu_custom_call.1} parent=47 // pred_fallthru
          _
        // Predicated region
        $region57: #{tpu_custom_call.1} parent=47 // pred_check
          %p416 = pneg %p115
        $region58: #{tpu_custom_call.1} parent=47 // pred_check_branch
          %418 = sbr.rel (%p416) target = $region60
        $region59: #{tpu_custom_call.1} parent=47 // pred_region
          %s419 = smul.u32 2, %s33
          %p420 = scmp.lt.s32.totalorder %s32, 1
          %s421 = scalar_select %p420, %s32, 1
          %p422 = scmp.lt.s32.totalorder %s419, 1
          %s423 = scalar_select %p422, %s419, 1
          %s424 = smul.addr %s421, 2
          %s425 = sadd.s32 %s423, %s424
          %s426 = scalar_lea.vmem %s2, %s425
          %s427 = smul.u32 2, %s33
        $region60: #{tpu_custom_call.1} parent=47 // pred_fallthru
          _
      $region48: #{tpu_custom_call.1} parent=5 // pred_fallthru
        _
      %p428 = scmp.le.s32.totalorder 1, %s25
      %p429 = scmp.lt.s32.totalorder %s25, 3
      %p430 = pnand %p428, %p429
      %p431 = pneg %p430
      // Predicated region
      $region61: #{tpu_custom_call.1} parent=5 // pred_check
        _
      $region62: #{tpu_custom_call.1} parent=5 // pred_check_branch
        %433 = sbr.rel (%p430) target = $region64
      $region63: #{tpu_custom_call.1} parent=5 // pred_region
        %s434 = ssub.s32 %s25, 1
        %s435 = sand.u32 %s52, 1
        %s436 = scalar_lea.sflag [#allocation5], %s435
        %s437 = sand.u32 %s52, 1
        %s438 = smul.addr %s437, 4
        %s439 = scalar_lea.vmem [#allocation4], %s438
        // Predicated region
        $region65: #{tpu_custom_call.1} parent=63 // pred_check
          %p440 = pneg %p65
        $region66: #{tpu_custom_call.1} parent=63 // pred_check_branch
          %442 = sbr.rel (%p440) target = $region68
        $region67: #{tpu_custom_call.1} parent=63 // pred_region
          %443 = dma.done %s436, 64
        $region68: #{tpu_custom_call.1} parent=63 // pred_fallthru
          _
        // Predicated region
        $region69: #{tpu_custom_call.1} parent=63 // pred_check
          %p444 = pneg %p142
        $region70: #{tpu_custom_call.1} parent=63 // pred_check_branch
          %446 = sbr.rel (%p444) target = $region72
        $region71: #{tpu_custom_call.1} parent=63 // pred_region
          %447 = dma.done [#allocation8], 64
        $region72: #{tpu_custom_call.1} parent=63 // pred_fallthru
          _
        // Predicated region
        $region73: #{tpu_custom_call.1} parent=63 // pred_check
          %p448 = pneg %p163
        $region74: #{tpu_custom_call.1} parent=63 // pred_check_branch
          %450 = sbr.rel (%p448) target = $region76
        $region75: #{tpu_custom_call.1} parent=63 // pred_region
          %451 = dma.done [#allocation8], 64
        $region76: #{tpu_custom_call.1} parent=63 // pred_fallthru
          _
        // Predicated region
        $region77: #{tpu_custom_call.1} parent=63 // pred_check
          %p452 = pneg %p205
        $region78: #{tpu_custom_call.1} parent=63 // pred_check_branch
          %454 = sbr.rel (%p452) target = $region80
        $region79: #{tpu_custom_call.1} parent=63 // pred_region
          %455 = dma.done [#allocation11], 16
        $region80: #{tpu_custom_call.1} parent=63 // pred_fallthru
          _
        %s456 = sand.u32 %s52, 1
        %s457 = scalar_lea.sflag [#allocation5], %s456
        %s458 = sand.u32 %s52, 1
        %s459 = smul.addr %s458, 4
        %s460 = scalar_lea.vmem [#allocation4], %s459
        %p461 = pneg %p65
        %p462 = pneg %p62
        %s463 = smul.u32 2, %s35
        %p464 = scmp.lt.s32.totalorder %s34, 1
        %s465 = scalar_select %p464, %s34, 1
        %p466 = scmp.lt.s32.totalorder %s463, 1
        %s467 = scalar_select %p466, %s463, 1
        %s468 = smul.addr %s465, 2
        %s469 = sadd.s32 %s467, %s468
        %s470 = smul.addr %s469, 2
        %s471 = scalar_lea.vmem %s1, %s470
        %p472 = pneg %p93
        %p473 = pneg %p90
        %s474 = smul.u32 2, %s35
        %p475 = scmp.lt.s32.totalorder %s34, 1
        %s476 = scalar_select %p475, %s34, 1
        %p477 = scmp.lt.s32.totalorder %s474, 1
        %s478 = scalar_select %p477, %s474, 1
        %s479 = smul.addr %s476, 2
        %s480 = sadd.s32 %s478, %s479
        %s481 = scalar_lea.vmem %s2, %s480
        %p482 = pneg %p121
        %p483 = pneg %p118
        %p484 = pneg %p142
        %p485 = pneg %p139
        %p486 = pneg %p163
        %p487 = pneg %p160
        %p488 = pneg %p184
        %p489 = pneg %p181
        %p490 = pneg %p205
        %p491 = pneg %p202
        %p492 = pneg %p226
        %p493 = pneg %p223
        %p494 = pneg %p247
        %p495 = pneg %p244
        %p496 = pneg %p268
        %p497 = pneg %p265
        %p498 = pneg %p289
        %p499 = pneg %p286
        %p500 = pneg %p315
        %p501 = pneg %p312
        %s502 = sand.u32 %s302, 1
        %s503 = scalar_lea.sflag [#allocation6], %s502
        %s504 = sand.u32 %s302, 1
        %s505 = scalar_lea.vmem [#allocation12], %s504
        %s506 = smul.u32 2, %s35
        %s507 = smul.u32 2, %s35
        %p508 = scmp.lt.s32.totalorder %s34, 1
        %s509 = scalar_select %p508, %s34, 1
        %p510 = scmp.lt.s32.totalorder %s507, 1
        %s511 = scalar_select %p510, %s507, 1
        %s512 = smul.addr %s509, 2
        %s513 = sadd.s32 %s511, %s512
        %s514 = smul.addr %s513, 2
        %s515 = scalar_lea.vmem %s1, %s514
        %s516 = smul.u32 2, %s35
        %s517 = smul.u32 2, %s35
        %p518 = scmp.lt.s32.totalorder %s34, 1
        %s519 = scalar_select %p518, %s34, 1
        %p520 = scmp.lt.s32.totalorder %s517, 1
        %s521 = scalar_select %p520, %s517, 1
        %s522 = smul.addr %s519, 2
        %s523 = sadd.s32 %s521, %s522
        %s524 = scalar_lea.vmem %s2, %s523
        %s525 = smul.u32 2, %s35
        %p526 = scmp.eq.s32.totalorder %s35, 0
        // Predicated region
        $region81: #{tpu_custom_call.1} parent=63 // pred_check
          %p527 = pneg %p526
        $region82: #{tpu_custom_call.1} parent=63 // pred_check_branch
          %529 = sbr.rel (%p527) target = $region84
        $region83: #{tpu_custom_call.1} parent=63 // pred_region
          %vm530 = vcmask 24576
          %531 = vst.msk [vmem:[#allocation2] sm:$0x1] %vm530, 0.0
          %532 = vst.msk [vmem:[#allocation3] sm:$0x1] %vm530, 0.0
        $region84: #{tpu_custom_call.1} parent=63 // pred_fallthru
          _
        %v533 = vld [vmem:[%s524] sm:$0x3]
        %v534 = vunpack.c.l.bf16 %v533
        %v535 = vld [vmem:[#allocation2] sm:$0x1]
        %v536 = vld [vmem:[%s439] sm:$0xf]
        %v537 = vunpack.c.l.bf16 %v536
        %v539 = vlaneseq
        %v540 = vshrl.u32 %v539, 7
        %v541 = vsub.s32 0, %v540
        %v542 = vrot.slane %v534, %v541
        %v543 = vlaneseq
        %v544 = vshrl.u32 %v543, 7
        %v545 = vsub.s32 2, %v544
        %v546 = vrot.slane %v534, %v545
        %v549 = vlaneseq
        %v550 = vshrl.u32 %v549, 7
        %v551 = vsub.s32 0, %v550
        %v552 = vrot.slane %v542, %v551
        %v553 = vlaneseq
        %v554 = vshrl.u32 %v553, 7
        %v555 = vsub.s32 0, %v554
        %v556 = vrot.slane %v546, %v555
        %v559 = vcombine.low %v552, %v556
        %v561 = vmul.f32 %v537, %v559
        %v563 = vcombine.high %v561, %v561
        %vm565 = vcmask 1043456
        %v566 = vsel %vm565, %v561, 0.0
        %v567 = vsel %vm565, %v563, 0.0
        %v568 = vadd.f32 %v566, %v567
        %569 = vadd.xlane.f32.xlu0 %v568
        %v570 = vpop.xlane.xlu0 %569
        %v572 = vlaneseq
        %v573 = vshrl.u32 %v572, 7
        %v574 = vsub.s32 0, %v573
        %v575 = vrot.slane %v570, %v574
        %v576 = vlaneseq
        %v577 = vshrl.u32 %v576, 7
        %v578 = vsub.s32 1, %v577
        %v579 = vrot.slane %v570, %v578
        %v580 = vlaneseq
        %v581 = vshrl.u32 %v580, 7
        %v582 = vsub.s32 2, %v581
        %v583 = vrot.slane %v570, %v582
        %v584 = vlaneseq
        %v585 = vshrl.u32 %v584, 7
        %v586 = vsub.s32 3, %v585
        %v587 = vrot.slane %v570, %v586
        %v588 = vcombine.low %v575, %v579
        %v589 = vcombine.low %v583, %v587
        %v591 = vunpack.c.l.s4 1966171168
        %v592 = vunpack.c.0.s8 %v591
        %v593 = vlaneseq
        %v594 = vshrl.u32 %v593, 7
        %v595 = vsub.s32 %v592, %v594
        %v596 = vrot.slane %v588, %v595
        %v598 = vunpack.c.l.s4 1966171168
        %v599 = vunpack.c.0.s8 %v598
        %v600 = vlaneseq
        %v601 = vshrl.u32 %v600, 7
        %v602 = vsub.s32 %v599, %v601
        %v603 = vrot.slane %v589, %v602
        %v604 = vcombine.low %v596, %v603
        %v606 = vunpack.c.l.s4 1966171168
        %v607 = vunpack.c.0.s8 %v606
        %v608 = vlaneseq
        %v609 = vshrl.u32 %v608, 7
        %v610 = vsub.s32 %v607, %v609
        %v611 = vrot.slane %v604, %v610
        %612 = vset.pattern.permute.xlu0 0
        %613 = vperm.xlu0 %612, %v611
        %v614 = vpop.permute.xlu0 %613
        %v615 = vlaneseq
        %v616 = vand.u32 %v615, 127
        %v617 = vlaneseq
        %v618 = vshrl.u32 %v617, 7
        %v619 = vsub.s32 %v616, %v618
        %v620 = vrot.slane %v614, %v619
        %v622 = vunpack.c.l.s4 1966171168
        %v623 = vunpack.c.0.s8 %v622
        %v624 = vlaneseq
        %v625 = vshrl.u32 %v624, 7
        %v626 = vsub.s32 %v623, %v625
        %v627 = vrot.slane %v620, %v626
        %v629 = vunpack.c.l.s4 1966171168
        %v630 = vunpack.c.0.s8 %v629
        %v631 = vlaneseq
        %v632 = vshrl.u32 %v631, 7
        %v633 = vsub.s32 %v630, %v632
        %v634 = vrot.slane %v627, %v633
        %v636 = vadd.f32 %v535, %v634
        %vm637 = vcmask 24576
        %638 = vst.msk [vmem:[#allocation2] sm:$0x1] %vm637, %v636
        %v639 = vld [vmem:[#allocation3] sm:$0x1]
        %v640 = vld [vmem:[%s515] sm:$0xf]
        %v641 = vunpack.c.l.bf16 %v640
        %v642 = vmul.f32 %v641, %v559
        %v644 = vcombine.high %v642, %v642
        %v646 = vsel %vm565, %v642, 0.0
        %v647 = vsel %vm565, %v644, 0.0
        %v648 = vadd.f32 %v646, %v647
        %649 = vadd.xlane.f32.xlu0 %v648
        %v650 = vpop.xlane.xlu0 %649
        %v652 = vlaneseq
        %v653 = vshrl.u32 %v652, 7
        %v654 = vsub.s32 0, %v653
        %v655 = vrot.slane %v650, %v654
        %v656 = vlaneseq
        %v657 = vshrl.u32 %v656, 7
        %v658 = vsub.s32 1, %v657
        %v659 = vrot.slane %v650, %v658
        %v660 = vlaneseq
        %v661 = vshrl.u32 %v660, 7
        %v662 = vsub.s32 2, %v661
        %v663 = vrot.slane %v650, %v662
        %v664 = vlaneseq
        %v665 = vshrl.u32 %v664, 7
        %v666 = vsub.s32 3, %v665
        %v667 = vrot.slane %v650, %v666
        %v668 = vcombine.low %v655, %v659
        %v669 = vcombine.low %v663, %v667
        %v671 = vunpack.c.l.s4 1966171168
        %v672 = vunpack.c.0.s8 %v671
        %v673 = vlaneseq
        %v674 = vshrl.u32 %v673, 7
        %v675 = vsub.s32 %v672, %v674
        %v676 = vrot.slane %v668, %v675
        %v678 = vunpack.c.l.s4 1966171168
        %v679 = vunpack.c.0.s8 %v678
        %v680 = vlaneseq
        %v681 = vshrl.u32 %v680, 7
        %v682 = vsub.s32 %v679, %v681
        %v683 = vrot.slane %v669, %v682
        %v684 = vcombine.low %v676, %v683
        %v686 = vunpack.c.l.s4 1966171168
        %v687 = vunpack.c.0.s8 %v686
        %v688 = vlaneseq
        %v689 = vshrl.u32 %v688, 7
        %v690 = vsub.s32 %v687, %v689
        %v691 = vrot.slane %v684, %v690
        %692 = vset.pattern.permute.xlu0 0
        %693 = vperm.xlu0 %692, %v691
        %v694 = vpop.permute.xlu0 %693
        %v695 = vlaneseq
        %v696 = vshrl.u32 %v695, 7
        %v697 = vsub.s32 %v616, %v696
        %v698 = vrot.slane %v694, %v697
        %v700 = vunpack.c.l.s4 1966171168
        %v701 = vunpack.c.0.s8 %v700
        %v702 = vlaneseq
        %v703 = vshrl.u32 %v702, 7
        %v704 = vsub.s32 %v701, %v703
        %v705 = vrot.slane %v698, %v704
        %v707 = vunpack.c.l.s4 1966171168
        %v708 = vunpack.c.0.s8 %v707
        %v709 = vlaneseq
        %v710 = vshrl.u32 %v709, 7
        %v711 = vsub.s32 %v708, %v710
        %v712 = vrot.slane %v705, %v711
        %v714 = vadd.f32 %v639, %v712
        %715 = vst.msk [vmem:[#allocation3] sm:$0x1] %vm637, %v714
        // Predicated region
        $region85: #{tpu_custom_call.1} parent=63 // pred_check
          %p716 = pneg %p526
        $region86: #{tpu_custom_call.1} parent=63 // pred_check_branch
          %718 = sbr.rel (%p716) target = $region88
        $region87: #{tpu_custom_call.1} parent=63 // pred_region
          %v719 = vld [vmem:[#allocation2] sm:$0x1]
          %v720 = vmul.f32 %v719, 0.00390625
          %v721 = vld [vmem:[#allocation3] sm:$0x1]
          %v722 = vmul.f32 %v721, 0.00390625
          %v723 = vld [vmem:[#allocation7] sm:$0xf]
          %v724 = vld [vmem:[#allocation9] sm:$0xf]
          %v725 = vld [vmem:[%s5] sm:$0xff]
          %v726 = vld [vmem:[#allocation10] sm:$0x1]
          %vm727 = vcmask 31744
          %v729 = vsel %vm727, %v722, 0
          %v732 = vsel %vm565, %v724, 0
          %734 = vmatprep.subr.mxu0 0.0
          %735 = vmatpush1.msra.mxu0 %v732
          %736 = vmatprep.subr.mxu0 0.0
          %737 = vmatpush1.msra.mxu0 0.0
          %738 = vmatprep.subr.mxu0 0.0
          %739 = vmatpush1.msra.mxu0 0.0
          %740 = vmatprep.subr.mxu0 0.0
          %741 = vmatpush1.msra.mxu0 0.0
          %742 = vmatprep.subr.mxu0 0.0
          %743 = vmatpush1.msra.mxu0 0.0
          %744 = vmatprep.subr.mxu0 0.0
          %745 = vmatpush1.msra.mxu0 0.0
          %746 = vmatprep.subr.mxu0 0.0
          %747 = vmatpush1.msra.mxu0 0.0
          %748 = vmatprep.subr.mxu0 0.0
          %749 = vmatpush1.msra.mxu0 0.0
          %750 = vmatprep.subr.mxu0 0.0
          %751 = vmatpush1.msra.mxu0 0.0
          %752 = vmatprep.subr.mxu0 0.0
          %753 = vmatpush1.msra.mxu0 0.0
          %754 = vmatprep.subr.mxu0 0.0
          %755 = vmatpush1.msra.mxu0 0.0
          %756 = vmatprep.subr.mxu0 0.0
          %757 = vmatpush1.msra.mxu0 0.0
          %758 = vmatprep.subr.mxu0 0.0
          %759 = vmatpush1.msra.mxu0 0.0
          %760 = vmatprep.subr.mxu0 0.0
          %761 = vmatpush1.msra.mxu0 0.0
          %762 = vmatprep.subr.mxu0 0.0
          %763 = vmatpush1.msra.mxu0 0.0
          %764 = vmatprep.subr.mxu0 0.0
          %765 = vmatpush1.msra.mxu0 0.0
          %766 = vmatprep.subr.mxu0 0.0
          %767 = vmatpush1.msra.mxu0 0.0
          %768 = vmatprep.subr.mxu0 0.0
          %769 = vmatpush1.msra.mxu0 0.0
          %770 = vmatprep.subr.mxu0 0.0
          %771 = vmatpush1.msra.mxu0 0.0
          %772 = vmatprep.subr.mxu0 0.0
          %773 = vmatpush1.msra.mxu0 0.0
          %774 = vmatprep.subr.mxu0 0.0
          %775 = vmatpush1.msra.mxu0 0.0
          %776 = vmatprep.subr.mxu0 0.0
          %777 = vmatpush1.msra.mxu0 0.0
          %778 = vmatprep.subr.mxu0 0.0
          %779 = vmatpush1.msra.mxu0 0.0
          %780 = vmatprep.subr.mxu0 0.0
          %781 = vmatpush1.msra.mxu0 0.0
          %782 = vmatprep.subr.mxu0 0.0
          %783 = vmatpush1.msra.mxu0 0.0
          %784 = vmatprep.subr.mxu0 0.0
          %785 = vmatpush1.msra.mxu0 0.0
          %786 = vmatprep.subr.mxu0 0.0
          %787 = vmatpush1.msra.mxu0 0.0
          %788 = vmatprep.subr.mxu0 0.0
          %789 = vmatpush1.msra.mxu0 0.0
          %790 = vmatprep.subr.mxu0 0.0
          %791 = vmatpush1.msra.mxu0 0.0
          %792 = vmatprep.subr.mxu0 0.0
          %793 = vmatpush1.msra.mxu0 0.0
          %794 = vmatprep.subr.mxu0 0.0
          %795 = vmatpush1.msra.mxu0 0.0
          %796 = vmatprep.subr.mxu0 0.0
          %797 = vmatpush1.msra.mxu0 0.0
          %798 = vmatprep.mubr.f32.mxu0 0.0
          %799 = vmatmul.mubr.f32.gmra.mrb[0].mxu0 %v729
          %v800 = vpop.f32.mrb[0].mxu0
          %v801 = vadd.f32 0.0, %v800
          %v802 = vpop.f32.mrb[0].mxu0
          %803 = vdwg.mxu0
          %v805 = vsel %vm727, %v720, 0
          %v808 = vsel %vm565, %v723, 0
          %810 = vmatprep.subr.mxu0 0.0
          %811 = vmatpush1.msra.mxu0 %v808
          %812 = vmatprep.subr.mxu0 0.0
          %813 = vmatpush1.msra.mxu0 0.0
          %814 = vmatprep.subr.mxu0 0.0
          %815 = vmatpush1.msra.mxu0 0.0
          %816 = vmatprep.subr.mxu0 0.0
          %817 = vmatpush1.msra.mxu0 0.0
          %818 = vmatprep.subr.mxu0 0.0
          %819 = vmatpush1.msra.mxu0 0.0
          %820 = vmatprep.subr.mxu0 0.0
          %821 = vmatpush1.msra.mxu0 0.0
          %822 = vmatprep.subr.mxu0 0.0
          %823 = vmatpush1.msra.mxu0 0.0
          %824 = vmatprep.subr.mxu0 0.0
          %825 = vmatpush1.msra.mxu0 0.0
          %826 = vmatprep.subr.mxu0 0.0
          %827 = vmatpush1.msra.mxu0 0.0
          %828 = vmatprep.subr.mxu0 0.0
          %829 = vmatpush1.msra.mxu0 0.0
          %830 = vmatprep.subr.mxu0 0.0
          %831 = vmatpush1.msra.mxu0 0.0
          %832 = vmatprep.subr.mxu0 0.0
          %833 = vmatpush1.msra.mxu0 0.0
          %834 = vmatprep.subr.mxu0 0.0
          %835 = vmatpush1.msra.mxu0 0.0
          %836 = vmatprep.subr.mxu0 0.0
          %837 = vmatpush1.msra.mxu0 0.0
          %838 = vmatprep.subr.mxu0 0.0
          %839 = vmatpush1.msra.mxu0 0.0
          %840 = vmatprep.subr.mxu0 0.0
          %841 = vmatpush1.msra.mxu0 0.0
          %842 = vmatprep.subr.mxu0 0.0
          %843 = vmatpush1.msra.mxu0 0.0
          %844 = vmatprep.subr.mxu0 0.0
          %845 = vmatpush1.msra.mxu0 0.0
          %846 = vmatprep.subr.mxu0 0.0
          %847 = vmatpush1.msra.mxu0 0.0
          %848 = vmatprep.subr.mxu0 0.0
          %849 = vmatpush1.msra.mxu0 0.0
          %850 = vmatprep.subr.mxu0 0.0
          %851 = vmatpush1.msra.mxu0 0.0
          %852 = vmatprep.subr.mxu0 0.0
          %853 = vmatpush1.msra.mxu0 0.0
          %854 = vmatprep.subr.mxu0 0.0
          %855 = vmatpush1.msra.mxu0 0.0
          %856 = vmatprep.subr.mxu0 0.0
          %857 = vmatpush1.msra.mxu0 0.0
          %858 = vmatprep.subr.mxu0 0.0
          %859 = vmatpush1.msra.mxu0 0.0
          %860 = vmatprep.subr.mxu0 0.0
          %861 = vmatpush1.msra.mxu0 0.0
          %862 = vmatprep.subr.mxu0 0.0
          %863 = vmatpush1.msra.mxu0 0.0
          %864 = vmatprep.subr.mxu0 0.0
          %865 = vmatpush1.msra.mxu0 0.0
          %866 = vmatprep.subr.mxu0 0.0
          %867 = vmatpush1.msra.mxu0 0.0
          %868 = vmatprep.subr.mxu0 0.0
          %869 = vmatpush1.msra.mxu0 0.0
          %870 = vmatprep.subr.mxu0 0.0
          %871 = vmatpush1.msra.mxu0 0.0
          %872 = vmatprep.subr.mxu0 0.0
          %873 = vmatpush1.msra.mxu0 0.0
          %874 = vmatprep.mubr.f32.mxu0 0.0
          %875 = vmatmul.mubr.f32.gmra.mrb[0].mxu0 %v805
          %v876 = vpop.f32.mrb[0].mxu0
          %v877 = vadd.f32 %v801, %v876
          %v878 = vpop.f32.mrb[0].mxu0
          %879 = vdwg.mxu0
          %v880 = vmul.f32 %v877, 0.999995
          %v881 = vmax.f32 %v880, 0.0
          %vm882 = vcmask 64512
          %v884 = vsel %vm882, %v881, 0
          %886 = vmatprep.subr.mxu0 0.0
          %887 = vmatpush1.msra.mxu0 %v725
          %888 = vmatprep.subr.mxu0 0.0
          %889 = vmatpush1.msra.mxu0 0.0
          %890 = vmatprep.subr.mxu0 0.0
          %891 = vmatpush1.msra.mxu0 0.0
          %892 = vmatprep.subr.mxu0 0.0
          %893 = vmatpush1.msra.mxu0 0.0
          %894 = vmatprep.subr.mxu0 0.0
          %895 = vmatpush1.msra.mxu0 0.0
          %896 = vmatprep.subr.mxu0 0.0
          %897 = vmatpush1.msra.mxu0 0.0
          %898 = vmatprep.subr.mxu0 0.0
          %899 = vmatpush1.msra.mxu0 0.0
          %900 = vmatprep.subr.mxu0 0.0
          %901 = vmatpush1.msra.mxu0 0.0
          %902 = vmatprep.subr.mxu0 0.0
          %903 = vmatpush1.msra.mxu0 0.0
          %904 = vmatprep.subr.mxu0 0.0
          %905 = vmatpush1.msra.mxu0 0.0
          %906 = vmatprep.subr.mxu0 0.0
          %907 = vmatpush1.msra.mxu0 0.0
          %908 = vmatprep.subr.mxu0 0.0
          %909 = vmatpush1.msra.mxu0 0.0
          %910 = vmatprep.subr.mxu0 0.0
          %911 = vmatpush1.msra.mxu0 0.0
          %912 = vmatprep.subr.mxu0 0.0
          %913 = vmatpush1.msra.mxu0 0.0
          %914 = vmatprep.subr.mxu0 0.0
          %915 = vmatpush1.msra.mxu0 0.0
          %916 = vmatprep.subr.mxu0 0.0
          %917 = vmatpush1.msra.mxu0 0.0
          %918 = vmatprep.subr.mxu0 0.0
          %919 = vmatpush1.msra.mxu0 0.0
          %920 = vmatprep.subr.mxu0 0.0
          %921 = vmatpush1.msra.mxu0 0.0
          %922 = vmatprep.subr.mxu0 0.0
          %923 = vmatpush1.msra.mxu0 0.0
          %924 = vmatprep.subr.mxu0 0.0
          %925 = vmatpush1.msra.mxu0 0.0
          %926 = vmatprep.subr.mxu0 0.0
          %927 = vmatpush1.msra.mxu0 0.0
          %928 = vmatprep.subr.mxu0 0.0
          %929 = vmatpush1.msra.mxu0 0.0
          %930 = vmatprep.subr.mxu0 0.0
          %931 = vmatpush1.msra.mxu0 0.0
          %932 = vmatprep.subr.mxu0 0.0
          %933 = vmatpush1.msra.mxu0 0.0
          %934 = vmatprep.subr.mxu0 0.0
          %935 = vmatpush1.msra.mxu0 0.0
          %936 = vmatprep.subr.mxu0 0.0
          %937 = vmatpush1.msra.mxu0 0.0
          %938 = vmatprep.subr.mxu0 0.0
          %939 = vmatpush1.msra.mxu0 0.0
          %940 = vmatprep.subr.mxu0 0.0
          %941 = vmatpush1.msra.mxu0 0.0
          %942 = vmatprep.subr.mxu0 0.0
          %943 = vmatpush1.msra.mxu0 0.0
          %944 = vmatprep.subr.mxu0 0.0
          %945 = vmatpush1.msra.mxu0 0.0
          %946 = vmatprep.subr.mxu0 0.0
          %947 = vmatpush1.msra.mxu0 0.0
          %948 = vmatprep.subr.mxu0 0.0
          %949 = vmatpush1.msra.mxu0 0.0
          %950 = vmatprep.mubr.f32.mxu0 0.0
          %951 = vmatmul.mubr.f32.gmra.mrb[0].mxu0 %v884
          %v952 = vpop.f32.mrb[0].mxu0
          %v953 = vadd.f32 %v726, %v952
          %v954 = vpop.f32.mrb[0].mxu0
          %955 = vdwg.mxu0
          %v956 = vmul.f32 %v953, 0.999995
          %v957 = vmul.f32 %v956, 0.029411765
          %vm958 = vcmask 90112
          %v959 = vsel %vm958, %v957, -inf
          %960 = vmax.xlane.f32.xlu0 %v959
          %v961 = vpop.xlane.xlu0 %960
          %v962 = vsub.f32 %v957, %v961
          %v963 = vmul.f32 %v962, 1.442695
          %v964 = vpow.pop %v963
          %v965 = vsel %vm958, %v964, 0.0
          %966 = vadd.xlane.f32.xlu0 %v965
          %v967 = vpop.xlane.xlu0 %966
          %v968 = vrcp.pop %v967
          %v969 = vmul.f32 %v964, %v968
          %v970 = vld [vmem:[%s7] sm:$0xf]
          %v971 = vld [vmem:[%s8] sm:$0xf]
          %v972 = vld [vmem:[%s9] sm:$0xff]
          %v973 = vld [vmem:[%s10] sm:$0x1]
          %v975 = vsel %vm565, %v971, 0
          %977 = vmatprep.subr.mxu0 0.0
          %978 = vmatpush1.msra.mxu0 %v975
          %979 = vmatprep.subr.mxu0 0.0
          %980 = vmatpush1.msra.mxu0 0.0
          %981 = vmatprep.subr.mxu0 0.0
          %982 = vmatpush1.msra.mxu0 0.0
          %983 = vmatprep.subr.mxu0 0.0
          %984 = vmatpush1.msra.mxu0 0.0
          %985 = vmatprep.subr.mxu0 0.0
          %986 = vmatpush1.msra.mxu0 0.0
          %987 = vmatprep.subr.mxu0 0.0
          %988 = vmatpush1.msra.mxu0 0.0
          %989 = vmatprep.subr.mxu0 0.0
          %990 = vmatpush1.msra.mxu0 0.0
          %991 = vmatprep.subr.mxu0 0.0
          %992 = vmatpush1.msra.mxu0 0.0
          %993 = vmatprep.subr.mxu0 0.0
          %994 = vmatpush1.msra.mxu0 0.0
          %995 = vmatprep.subr.mxu0 0.0
          %996 = vmatpush1.msra.mxu0 0.0
          %997 = vmatprep.subr.mxu0 0.0
          %998 = vmatpush1.msra.mxu0 0.0
          %999 = vmatprep.subr.mxu0 0.0
          %1000 = vmatpush1.msra.mxu0 0.0
          %1001 = vmatprep.subr.mxu0 0.0
          %1002 = vmatpush1.msra.mxu0 0.0
          %1003 = vmatprep.subr.mxu0 0.0
          %1004 = vmatpush1.msra.mxu0 0.0
          %1005 = vmatprep.subr.mxu0 0.0
          %1006 = vmatpush1.msra.mxu0 0.0
          %1007 = vmatprep.subr.mxu0 0.0
          %1008 = vmatpush1.msra.mxu0 0.0
          %1009 = vmatprep.subr.mxu0 0.0
          %1010 = vmatpush1.msra.mxu0 0.0
          %1011 = vmatprep.subr.mxu0 0.0
          %1012 = vmatpush1.msra.mxu0 0.0
          %1013 = vmatprep.subr.mxu0 0.0
          %1014 = vmatpush1.msra.mxu0 0.0
          %1015 = vmatprep.subr.mxu0 0.0
          %1016 = vmatpush1.msra.mxu0 0.0
          %1017 = vmatprep.subr.mxu0 0.0
          %1018 = vmatpush1.msra.mxu0 0.0
          %1019 = vmatprep.subr.mxu0 0.0
          %1020 = vmatpush1.msra.mxu0 0.0
          %1021 = vmatprep.subr.mxu0 0.0
          %1022 = vmatpush1.msra.mxu0 0.0
          %1023 = vmatprep.subr.mxu0 0.0
          %1024 = vmatpush1.msra.mxu0 0.0
          %1025 = vmatprep.subr.mxu0 0.0
          %1026 = vmatpush1.msra.mxu0 0.0
          %1027 = vmatprep.subr.mxu0 0.0
          %1028 = vmatpush1.msra.mxu0 0.0
          %1029 = vmatprep.subr.mxu0 0.0
          %1030 = vmatpush1.msra.mxu0 0.0
          %1031 = vmatprep.subr.mxu0 0.0
          %1032 = vmatpush1.msra.mxu0 0.0
          %1033 = vmatprep.subr.mxu0 0.0
          %1034 = vmatpush1.msra.mxu0 0.0
          %1035 = vmatprep.subr.mxu0 0.0
          %1036 = vmatpush1.msra.mxu0 0.0
          %1037 = vmatprep.subr.mxu0 0.0
          %1038 = vmatpush1.msra.mxu0 0.0
          %1039 = vmatprep.subr.mxu0 0.0
          %1040 = vmatpush1.msra.mxu0 0.0
          %1041 = vmatprep.mubr.f32.mxu0 0.0
          %1042 = vmatmul.mubr.f32.gmra.mrb[0].mxu0 %v729
          %v1043 = vpop.f32.mrb[0].mxu0
          %v1044 = vadd.f32 0.0, %v1043
          %v1045 = vpop.f32.mrb[0].mxu0
          %1046 = vdwg.mxu0
          %v1048 = vsel %vm565, %v970, 0
          %1050 = vmatprep.subr.mxu0 0.0
          %1051 = vmatpush1.msra.mxu0 %v1048
          %1052 = vmatprep.subr.mxu0 0.0
          %1053 = vmatpush1.msra.mxu0 0.0
          %1054 = vmatprep.subr.mxu0 0.0
          %1055 = vmatpush1.msra.mxu0 0.0
          %1056 = vmatprep.subr.mxu0 0.0
          %1057 = vmatpush1.msra.mxu0 0.0
          %1058 = vmatprep.subr.mxu0 0.0
          %1059 = vmatpush1.msra.mxu0 0.0
          %1060 = vmatprep.subr.mxu0 0.0
          %1061 = vmatpush1.msra.mxu0 0.0
          %1062 = vmatprep.subr.mxu0 0.0
          %1063 = vmatpush1.msra.mxu0 0.0
          %1064 = vmatprep.subr.mxu0 0.0
          %1065 = vmatpush1.msra.mxu0 0.0
          %1066 = vmatprep.subr.mxu0 0.0
          %1067 = vmatpush1.msra.mxu0 0.0
          %1068 = vmatprep.subr.mxu0 0.0
          %1069 = vmatpush1.msra.mxu0 0.0
          %1070 = vmatprep.subr.mxu0 0.0
          %1071 = vmatpush1.msra.mxu0 0.0
          %1072 = vmatprep.subr.mxu0 0.0
          %1073 = vmatpush1.msra.mxu0 0.0
          %1074 = vmatprep.subr.mxu0 0.0
          %1075 = vmatpush1.msra.mxu0 0.0
          %1076 = vmatprep.subr.mxu0 0.0
          %1077 = vmatpush1.msra.mxu0 0.0
          %1078 = vmatprep.subr.mxu0 0.0
          %1079 = vmatpush1.msra.mxu0 0.0
          %1080 = vmatprep.subr.mxu0 0.0
          %1081 = vmatpush1.msra.mxu0 0.0
          %1082 = vmatprep.subr.mxu0 0.0
          %1083 = vmatpush1.msra.mxu0 0.0
          %1084 = vmatprep.subr.mxu0 0.0
          %1085 = vmatpush1.msra.mxu0 0.0
          %1086 = vmatprep.subr.mxu0 0.0
          %1087 = vmatpush1.msra.mxu0 0.0
          %1088 = vmatprep.subr.mxu0 0.0
          %1089 = vmatpush1.msra.mxu0 0.0
          %1090 = vmatprep.subr.mxu0 0.0
          %1091 = vmatpush1.msra.mxu0 0.0
          %1092 = vmatprep.subr.mxu0 0.0
          %1093 = vmatpush1.msra.mxu0 0.0
          %1094 = vmatprep.subr.mxu0 0.0
          %1095 = vmatpush1.msra.mxu0 0.0
          %1096 = vmatprep.subr.mxu0 0.0
          %1097 = vmatpush1.msra.mxu0 0.0
          %1098 = vmatprep.subr.mxu0 0.0
          %1099 = vmatpush1.msra.mxu0 0.0
          %1100 = vmatprep.subr.mxu0 0.0
          %1101 = vmatpush1.msra.mxu0 0.0
          %1102 = vmatprep.subr.mxu0 0.0
          %1103 = vmatpush1.msra.mxu0 0.0
          %1104 = vmatprep.subr.mxu0 0.0
          %1105 = vmatpush1.msra.mxu0 0.0
          %1106 = vmatprep.subr.mxu0 0.0
          %1107 = vmatpush1.msra.mxu0 0.0
          %1108 = vmatprep.subr.mxu0 0.0
          %1109 = vmatpush1.msra.mxu0 0.0
          %1110 = vmatprep.subr.mxu0 0.0
          %1111 = vmatpush1.msra.mxu0 0.0
          %1112 = vmatprep.subr.mxu0 0.0
          %1113 = vmatpush1.msra.mxu0 0.0
          %1114 = vmatprep.mubr.f32.mxu0 0.0
          %1115 = vmatmul.mubr.f32.gmra.mrb[0].mxu0 %v805
          %v1116 = vpop.f32.mrb[0].mxu0
          %v1117 = vadd.f32 %v1044, %v1116
          %v1118 = vpop.f32.mrb[0].mxu0
          %1119 = vdwg.mxu0
          %v1120 = vmul.f32 %v1117, 0.999995
          %v1121 = vmax.f32 %v1120, 0.0
          %v1123 = vsel %vm882, %v1121, 0
          %1125 = vmatprep.subr.mxu0 0.0
          %1126 = vmatpush1.msra.mxu0 %v972
          %1127 = vmatprep.subr.mxu0 0.0
          %1128 = vmatpush1.msra.mxu0 0.0
          %1129 = vmatprep.subr.mxu0 0.0
          %1130 = vmatpush1.msra.mxu0 0.0
          %1131 = vmatprep.subr.mxu0 0.0
          %1132 = vmatpush1.msra.mxu0 0.0
          %1133 = vmatprep.subr.mxu0 0.0
          %1134 = vmatpush1.msra.mxu0 0.0
          %1135 = vmatprep.subr.mxu0 0.0
          %1136 = vmatpush1.msra.mxu0 0.0
          %1137 = vmatprep.subr.mxu0 0.0
          %1138 = vmatpush1.msra.mxu0 0.0
          %1139 = vmatprep.subr.mxu0 0.0
          %1140 = vmatpush1.msra.mxu0 0.0
          %1141 = vmatprep.subr.mxu0 0.0
          %1142 = vmatpush1.msra.mxu0 0.0
          %1143 = vmatprep.subr.mxu0 0.0
          %1144 = vmatpush1.msra.mxu0 0.0
          %1145 = vmatprep.subr.mxu0 0.0
          %1146 = vmatpush1.msra.mxu0 0.0
          %1147 = vmatprep.subr.mxu0 0.0
          %1148 = vmatpush1.msra.mxu0 0.0
          %1149 = vmatprep.subr.mxu0 0.0
          %1150 = vmatpush1.msra.mxu0 0.0
          %1151 = vmatprep.subr.mxu0 0.0
          %1152 = vmatpush1.msra.mxu0 0.0
          %1153 = vmatprep.subr.mxu0 0.0
          %1154 = vmatpush1.msra.mxu0 0.0
          %1155 = vmatprep.subr.mxu0 0.0
          %1156 = vmatpush1.msra.mxu0 0.0
          %1157 = vmatprep.subr.mxu0 0.0
          %1158 = vmatpush1.msra.mxu0 0.0
          %1159 = vmatprep.subr.mxu0 0.0
          %1160 = vmatpush1.msra.mxu0 0.0
          %1161 = vmatprep.subr.mxu0 0.0
          %1162 = vmatpush1.msra.mxu0 0.0
          %1163 = vmatprep.subr.mxu0 0.0
          %1164 = vmatpush1.msra.mxu0 0.0
          %1165 = vmatprep.subr.mxu0 0.0
          %1166 = vmatpush1.msra.mxu0 0.0
          %1167 = vmatprep.subr.mxu0 0.0
          %1168 = vmatpush1.msra.mxu0 0.0
          %1169 = vmatprep.subr.mxu0 0.0
          %1170 = vmatpush1.msra.mxu0 0.0
          %1171 = vmatprep.subr.mxu0 0.0
          %1172 = vmatpush1.msra.mxu0 0.0
          %1173 = vmatprep.subr.mxu0 0.0
          %1174 = vmatpush1.msra.mxu0 0.0
          %1175 = vmatprep.subr.mxu0 0.0
          %1176 = vmatpush1.msra.mxu0 0.0
          %1177 = vmatprep.subr.mxu0 0.0
          %1178 = vmatpush1.msra.mxu0 0.0
          %1179 = vmatprep.subr.mxu0 0.0
          %1180 = vmatpush1.msra.mxu0 0.0
          %1181 = vmatprep.subr.mxu0 0.0
          %1182 = vmatpush1.msra.mxu0 0.0
          %1183 = vmatprep.subr.mxu0 0.0
          %1184 = vmatpush1.msra.mxu0 0.0
          %1185 = vmatprep.subr.mxu0 0.0
          %1186 = vmatpush1.msra.mxu0 0.0
          %1187 = vmatprep.subr.mxu0 0.0
          %1188 = vmatpush1.msra.mxu0 0.0
          %1189 = vmatprep.mubr.f32.mxu0 0.0
          %1190 = vmatmul.mubr.f32.gmra.mrb[0].mxu0 %v1123
          %v1191 = vpop.f32.mrb[0].mxu0
          %v1192 = vadd.f32 %v973, %v1191
          %v1193 = vpop.f32.mrb[0].mxu0
          %1194 = vdwg.mxu0
          %v1195 = vmul.f32 %v1192, 0.999995
          %v1196 = vmul.f32 %v1195, 0.029411765
          %v1197 = vsel %vm958, %v1196, -inf
          %1198 = vmax.xlane.f32.xlu0 %v1197
          %v1199 = vpop.xlane.xlu0 %1198
          %v1200 = vsub.f32 %v1196, %v1199
          %v1201 = vmul.f32 %v1200, 1.442695
          %v1202 = vpow.pop %v1201
          %v1203 = vsel %vm958, %v1202, 0.0
          %1204 = vadd.xlane.f32.xlu0 %v1203
          %v1205 = vpop.xlane.xlu0 %1204
          %v1206 = vrcp.pop %v1205
          %v1207 = vmul.f32 %v1202, %v1206
          %1209 = vrot.lane.b32.xlu0 %v1207, 12
          %v1210 = vpop.permute.xlu0 %1209
          %vm1212 = vcmask 97280
          %v1213 = vsel %vm1212, %v969, %v1210
          %vm1214 = vcmask 188416
          %1215 = vst.msk [vmem:[%s505] sm:$0x1] %vm1214, %v1213
        $region88: #{tpu_custom_call.1} parent=63 // pred_fallthru
          _
        %s1216 = sand.u32 %s302, 1
        %s1217 = scalar_lea.sflag [#allocation6], %s1216
        %s1218 = sand.u32 %s302, 1
        %s1219 = scalar_lea.vmem [#allocation12], %s1218
        // Predicated region
        $region89: #{tpu_custom_call.1} parent=63 // pred_check
          %p1220 = pneg %p312
        $region90: #{tpu_custom_call.1} parent=63 // pred_check_branch
          %1222 = sbr.rel (%p1220) target = $region92
        $region91: #{tpu_custom_call.1} parent=63 // pred_region
          %s1224 = ssub.s32 16, 16
          %1225 = vsyncadd %s1217, %s1224
          %s1226 = smul.addr %s34, 16
          %s1227 = scalar_lea.hbm %s11, %s1226
          %s1229 = sshll.u32 %s1219, 4
          %s1230 = int_to_ptr.vmem [resolvable:$true] %s1229
          %1232 = dma.vmem_to_hbm [thread:$0]  %s1230, 16, %s1227, %s1217
        $region92: #{tpu_custom_call.1} parent=63 // pred_fallthru
          _
      $region64: #{tpu_custom_call.1} parent=5 // pred_fallthru
        _
      %p1233 = scmp.le.s32.totalorder 2, %s25
      // Predicated region
      $region93: #{tpu_custom_call.1} parent=5 // pred_check
        %p1234 = pneg %p1233
      $region94: #{tpu_custom_call.1} parent=5 // pred_check_branch
        %1236 = sbr.rel (%p1234) target = $region96
      $region95: #{tpu_custom_call.1} parent=5 // pred_region
        %s1237 = ssub.s32 %s25, 2
        // Predicated region
        $region97: #{tpu_custom_call.1} parent=95 // pred_check
          %p1238 = pneg %p318
        $region98: #{tpu_custom_call.1} parent=95 // pred_check_branch
          %1240 = sbr.rel (%p1238) target = $region100
        $region99: #{tpu_custom_call.1} parent=95 // pred_region
          %s1241 = sand.u32 %s303, 1
          %s1242 = scalar_lea.sflag [#allocation6], %s1241
          %s1243 = sand.u32 %s303, 1
          %s1244 = scalar_lea.vmem [#allocation12], %s1243
          %1245 = dma.done %s1242, 16
        $region100: #{tpu_custom_call.1} parent=95 // pred_fallthru
          _
      $region96: #{tpu_custom_call.1} parent=5 // pred_fallthru
        _
    $region6: #{tpu_custom_call.1} parent=1 // loop_footer
      %s29 = sadd.s32 1, %s25
    $region7: #{tpu_custom_call.1} parent=1 // loop_footer_branch
      %24 = sbr.rel target = $region3
    $region8: #{tpu_custom_call.1} parent=1 // loop_exit
      _
    %1246 = vsyncpa [#allocation5], 1
    %s1247 = scalar_lea.sflag [#allocation5], 1
    %1248 = vsyncpa %s1247, 1
    %1249 = vsyncpa [#allocation8], 1
    %1250 = vsyncpa [#allocation11], 1
    %1251 = vsyncpa [#allocation6], 1
    %s1252 = scalar_lea.sflag [#allocation6], 1
    %1253 = vsyncpa %s1252, 1

</llo_original>
